<compile_context>
chip_gen: v7x
topology: tpu7x:2x2x1
jax: 0.10.0
libtpu: 0.0.40
codegen_flags: <defaults>
</compile_context>

<pallas_src>
import math

import jax
import jax.numpy as jnp
from jax.experimental import pallas as pl
from jax.experimental.pallas import tpu as pltpu

K_IN = 784        # flattened 1x28x28 input (full last dim of x -> legal block)
H1 = 256
H2 = 128
N_OUT = 10
N_PAD = 128       # lane-dense (unmasked) output width
TM_MAX = 1024     # target batch tile (amortizes ~0.35 us/step grid overhead)


def mlp_kernel(x_ref, w1_ref, b1_ref, w2_ref, b2_ref, w3_ref, b3_ref, o_ref):
    # Cast the f32 x tile to bf16 in-kernel (saves a wrapper HBM pass).
    x_bf16 = x_ref[...].astype(jnp.bfloat16)

    # Layer 1: [TM, 784]bf16 @ [784, 256]bf16 -> f32 acc, + bias, ReLU
    h1 = jnp.dot(x_bf16, w1_ref[...], preferred_element_type=jnp.float32)
    h1 = jnp.maximum(h1 + b1_ref[...], 0.0)

    # Layer 2: [TM, 256] @ [256, 128] -> f32 acc, + bias, ReLU
    h2 = jnp.dot(h1.astype(jnp.bfloat16), w2_ref[...],
                 preferred_element_type=jnp.float32)
    h2 = jnp.maximum(h2 + b2_ref[...], 0.0)

    # Layer 3: [TM, 128] @ [128, 128] -> logits (columns 10..127 are zeros)
    h3 = jnp.dot(h2.astype(jnp.bfloat16), w3_ref[...],
                 preferred_element_type=jnp.float32)
    o_ref[...] = (h3 + b3_ref[...]).astype(o_ref.dtype)


def _choose_tm(batch):
    """Batch tile: multiple of 128 (v5e MXU M-tile), <= TM_MAX, and sized so
    large batches produce >= 2 grid steps (v7x megacore gets both TCs busy)."""
    half = -(-batch // 2)                       # cdiv(batch, 2)
    tm = min(TM_MAX, ((half + 127) // 128) * 128)
    return max(tm, 128)


@jax.jit
def mlp_forward(x, params):
    """x: [B, 1, 28, 28] (NCHW) or [B, 784]. Returns [B, 10] f32 logits."""
    w1, b1, w2, b2, w3, b3 = params
    x2d = x.reshape(-1, K_IN).astype(jnp.float32)   # == torch x.view(-1, 784)
    batch = x2d.shape[0]

    tm = _choose_tm(batch)
    grid = (pl.cdiv(batch, tm),)                    # partial last block is OK

    # MXU operands in bf16 (tiny one-time casts); biases stay f32.
    w1_b = w1.astype(jnp.bfloat16)
    w2_b = w2.astype(jnp.bfloat16)
    # Pad W3 / b3 columns 10 -> 128 for a lane-dense, unmasked output store.
    w3_p = (jnp.zeros((H2, N_PAD), jnp.bfloat16)
            .at[:, :N_OUT].set(w3.astype(jnp.bfloat16)))
    b3_p = jnp.zeros((1, N_PAD), jnp.float32).at[:, :N_OUT].set(b3)

    # Whole-array VMEM residents: no double-buffering / per-step bookkeeping.
    resident = pl.BlockSpec(memory_space=pltpu.MemorySpace.VMEM)

    out = pl.pallas_call(
        mlp_kernel,
        out_shape=jax.ShapeDtypeStruct((batch, N_PAD), jnp.bfloat16),
        grid=grid,
        in_specs=[
            pl.BlockSpec((tm, K_IN), lambda i: (i, 0)),   # x tile (pipelined)
            resident,                                     # W1 (bf16)
            resident,                                     # b1 (f32)
            resident,                                     # W2 (bf16)
            resident,                                     # b2 (f32)
            resident,                                     # W3 (bf16, padded)
            resident,                                     # b3 (f32, padded)
        ],
        out_specs=pl.BlockSpec((tm, N_PAD), lambda i: (i, 0)),
        compiler_params=pltpu.CompilerParams(
            dimension_semantics=("parallel",),            # megacore on v7x
            vmem_limit_bytes=48 * 1024 * 1024,            # under v7x 64 MiB
        ),
    )(x2d, w1_b, b1, w2_b, b2, w3_p, b3_p)

    return out[:, :N_OUT].astype(jnp.float32)


def init_params(key):
    """Deterministic init mimicking nn.Linear default (uniform +-1/sqrt(fan_in)).
    Weights are stored as (in_features, out_features)."""
    dims = [(K_IN, H1), (H1, H2), (H2, N_OUT)]
    params = []
    keys = jax.random.split(key, 2 * len(dims))
    for i, (fan_in, fan_out) in enumerate(dims):
        bound = 1.0 / math.sqrt(fan_in)
        w = jax.random.uniform(
            keys[2 * i], (fan_in, fan_out), jnp.float32, -bound, bound
        )
        b = jax.random.uniform(
            keys[2 * i + 1], (1, fan_out), jnp.float32, -bound, bound
        )
        params += [w, b]
    return tuple(params)


if __name__ == "__main__":
    key = jax.random.PRNGKey(0)
    k_param, k_x = jax.random.split(key)

    params = init_params(k_param)
    # Small, MNIST-shaped input consistent with the module: [B, 1, 28, 28] NCHW.
    x = jax.random.normal(k_x, (2, 1, 28, 28), dtype=jnp.float32)

    out = mlp_forward(x, params)
    out = jax.block_until_ready(out)

    # Sanity check against a plain-JAX reference using the same bf16-operand /
    # f32-accumulate arithmetic (and final bf16 logits rounding) as the kernel.
    w1, b1, w2, b2, w3, b3 = params
    x2d = x.reshape(-1, K_IN)
    h1 = jnp.maximum(
        jnp.dot(x2d.astype(jnp.bfloat16), w1.astype(jnp.bfloat16),
                preferred_element_type=jnp.float32) + b1, 0.0)
    h2 = jnp.maximum(
        jnp.dot(h1.astype(jnp.bfloat16), w2.astype(jnp.bfloat16),
                preferred_element_type=jnp.float32) + b2, 0.0)
    ref = (jnp.dot(h2.astype(jnp.bfloat16), w3.astype(jnp.bfloat16),
                   preferred_element_type=jnp.float32) + b3)
    ref = ref.astype(jnp.bfloat16).astype(jnp.float32)

    assert out.shape == (2, 10)
    assert jnp.allclose(out, ref, atol=2e-2, rtol=2e-2)

    print("KERNEL_OK")
</pallas_src>

<mosaic_0001>
module attributes {stable_mosaic.version = 11 : i64} {
  func.func @mlp_kernel(%arg0: i32, %arg1: memref<128x784xf32, #tpu.memory_space<vmem>>, %arg2: memref<784x256xbf16, #tpu.memory_space<vmem>>, %arg3: memref<1x256xf32, #tpu.memory_space<vmem>>, %arg4: memref<256x128xbf16, #tpu.memory_space<vmem>>, %arg5: memref<1x128xf32, #tpu.memory_space<vmem>>, %arg6: memref<128x128xbf16, #tpu.memory_space<vmem>>, %arg7: memref<1x128xf32, #tpu.memory_space<vmem>>, %arg8: memref<128x128xbf16, #tpu.memory_space<vmem>>) attributes {dimension_semantics = [#tpu.dimension_semantics<parallel>], iteration_bounds = array<i64: 1>, scalar_prefetch = 0 : i64, scratch_operands = 0 : i64, tpu.core_type = #tpu.core_type<tc>, window_params = [{transform_indices = @transform_0, window_bounds = array<i64: 128, 784>}, {pipeline_mode = #tpu.pipeline_mode<synchronous>, transform_indices = @transform_1, window_bounds = array<i64: 784, 256>}, {pipeline_mode = #tpu.pipeline_mode<synchronous>, transform_indices = @transform_2, window_bounds = array<i64: 1, 256>}, {pipeline_mode = #tpu.pipeline_mode<synchronous>, transform_indices = @transform_3, window_bounds = array<i64: 256, 128>}, {pipeline_mode = #tpu.pipeline_mode<synchronous>, transform_indices = @transform_4, window_bounds = array<i64: 1, 128>}, {pipeline_mode = #tpu.pipeline_mode<synchronous>, transform_indices = @transform_5, window_bounds = array<i64: 128, 128>}, {pipeline_mode = #tpu.pipeline_mode<synchronous>, transform_indices = @transform_6, window_bounds = array<i64: 1, 128>}, {transform_indices = @transform_7, window_bounds = array<i64: 128, 128>}]} {
    %c0 = arith.constant 0 : index
    %c0_0 = arith.constant 0 : index
    %0 = vector.load %arg1[%c0, %c0_0] : memref<128x784xf32, #tpu.memory_space<vmem>>, vector<128x784xf32>
    %1 = arith.truncf %0 : vector<128x784xf32> to vector<128x784xbf16>
    %c0_1 = arith.constant 0 : index
    %c0_2 = arith.constant 0 : index
    %2 = vector.load %arg2[%c0_1, %c0_2] : memref<784x256xbf16, #tpu.memory_space<vmem>>, vector<784x256xbf16>
    %cst = arith.constant dense<0.000000e+00> : vector<128x256xf32>
    %3 = tpu.matmul %1, %2, %cst {dimension_numbers = #tpu.dot_dimension_numbers<[1], [0], [0], [1], [0, 0, 1, 1], [], []>} : vector<128x784xbf16>, vector<784x256xbf16>, vector<128x256xf32> -> vector<128x256xf32>
    %c0_3 = arith.constant 0 : index
    %c0_4 = arith.constant 0 : index
    %4 = vector.load %arg3[%c0_3, %c0_4] : memref<1x256xf32, #tpu.memory_space<vmem>>, vector<1x256xf32>
    %5 = vector.broadcast %4 : vector<1x256xf32> to vector<128x256xf32>
    %6 = arith.addf %3, %5 : vector<128x256xf32>
    %cst_5 = arith.constant 0.000000e+00 : f32
    %7 = vector.broadcast %cst_5 : f32 to vector<128x256xf32>
    %8 = arith.maximumf %6, %7 : vector<128x256xf32>
    %9 = arith.truncf %8 : vector<128x256xf32> to vector<128x256xbf16>
    %c0_6 = arith.constant 0 : index
    %c0_7 = arith.constant 0 : index
    %10 = vector.load %arg4[%c0_6, %c0_7] : memref<256x128xbf16, #tpu.memory_space<vmem>>, vector<256x128xbf16>
    %cst_8 = arith.constant dense<0.000000e+00> : vector<128x128xf32>
    %11 = tpu.matmul %9, %10, %cst_8 {dimension_numbers = #tpu.dot_dimension_numbers<[1], [0], [0], [1], [0, 0, 1, 1], [], []>} : vector<128x256xbf16>, vector<256x128xbf16>, vector<128x128xf32> -> vector<128x128xf32>
    %c0_9 = arith.constant 0 : index
    %c0_10 = arith.constant 0 : index
    %12 = vector.load %arg5[%c0_9, %c0_10] : memref<1x128xf32, #tpu.memory_space<vmem>>, vector<1x128xf32>
    %13 = vector.broadcast %12 : vector<1x128xf32> to vector<128x128xf32>
    %14 = arith.addf %11, %13 : vector<128x128xf32>
    %cst_11 = arith.constant 0.000000e+00 : f32
    %15 = vector.broadcast %cst_11 : f32 to vector<128x128xf32>
    %16 = arith.maximumf %14, %15 : vector<128x128xf32>
    %17 = arith.truncf %16 : vector<128x128xf32> to vector<128x128xbf16>
    %c0_12 = arith.constant 0 : index
    %c0_13 = arith.constant 0 : index
    %18 = vector.load %arg6[%c0_12, %c0_13] : memref<128x128xbf16, #tpu.memory_space<vmem>>, vector<128x128xbf16>
    %cst_14 = arith.constant dense<0.000000e+00> : vector<128x128xf32>
    %19 = tpu.matmul %17, %18, %cst_14 {dimension_numbers = #tpu.dot_dimension_numbers<[1], [0], [0], [1], [0, 0, 1, 1], [], []>} : vector<128x128xbf16>, vector<128x128xbf16>, vector<128x128xf32> -> vector<128x128xf32>
    %c0_15 = arith.constant 0 : index
    %c0_16 = arith.constant 0 : index
    %20 = vector.load %arg7[%c0_15, %c0_16] : memref<1x128xf32, #tpu.memory_space<vmem>>, vector<1x128xf32>
    %21 = vector.broadcast %20 : vector<1x128xf32> to vector<128x128xf32>
    %22 = arith.addf %19, %21 : vector<128x128xf32>
    %23 = arith.truncf %22 : vector<128x128xf32> to vector<128x128xbf16>
    %c0_17 = arith.constant 0 : index
    %c0_18 = arith.constant 0 : index
    %24 = vector.load %arg8[%c0_17, %c0_18] : memref<128x128xbf16, #tpu.memory_space<vmem>>, vector<128x128xbf16>
    tpu.vector_store %arg8[%c0_17, %c0_18], %23 {strides = array<i32>} : memref<128x128xbf16, #tpu.memory_space<vmem>>, vector<128x128xbf16>,
    return
  }
  func.func @transform_0(%arg0: i32) -> (i32, i32) {
    %c0_i32 = arith.constant 0 : i32
    %c0_i32_0 = arith.constant 0 : i32
    return %arg0, %c0_i32 : i32, i32
  }
  func.func @transform_1(%arg0: i32) -> (i32, i32) {
    %c0_i32 = arith.constant 0 : i32
    %c0_i32_0 = arith.constant 0 : i32
    %c0_i32_1 = arith.constant 0 : i32
    return %c0_i32, %c0_i32_0 : i32, i32
  }
  func.func @transform_2(%arg0: i32) -> (i32, i32) {
    %c0_i32 = arith.constant 0 : i32
    %c0_i32_0 = arith.constant 0 : i32
    %c0_i32_1 = arith.constant 0 : i32
    return %c0_i32, %c0_i32_0 : i32, i32
  }
  func.func @transform_3(%arg0: i32) -> (i32, i32) {
    %c0_i32 = arith.constant 0 : i32
    %c0_i32_0 = arith.constant 0 : i32
    %c0_i32_1 = arith.constant 0 : i32
    return %c0_i32, %c0_i32_0 : i32, i32
  }
  func.func @transform_4(%arg0: i32) -> (i32, i32) {
    %c0_i32 = arith.constant 0 : i32
    %c0_i32_0 = arith.constant 0 : i32
    %c0_i32_1 = arith.constant 0 : i32
    return %c0_i32, %c0_i32_0 : i32, i32
  }
  func.func @transform_5(%arg0: i32) -> (i32, i32) {
    %c0_i32 = arith.constant 0 : i32
    %c0_i32_0 = arith.constant 0 : i32
    %c0_i32_1 = arith.constant 0 : i32
    return %c0_i32, %c0_i32_0 : i32, i32
  }
  func.func @transform_6(%arg0: i32) -> (i32, i32) {
    %c0_i32 = arith.constant 0 : i32
    %c0_i32_0 = arith.constant 0 : i32
    %c0_i32_1 = arith.constant 0 : i32
    return %c0_i32, %c0_i32_0 : i32, i32
  }
  func.func @transform_7(%arg0: i32) -> (i32, i32) {
    %c0_i32 = arith.constant 0 : i32
    %c0_i32_0 = arith.constant 0 : i32
    return %arg0, %c0_i32 : i32, i32
  }
}

</mosaic_0001>

<llo_original>
// kernel: mlp_forward.1
$region0: #{mlp_forward.1}
  #allocation0 [shape = 'u32[]', space=smem, size = 0x4, offset = 0x4, fixed_abs, tag = 'smem constant byte address 0x4 - core index']
  #allocation1 [shape = 'u32[144,128]{1,0:T(1,128)}', space=vmem, size = 0x12000, scoped, tag = 'internal scratch']
  %s0 = inlined_call_operand.vmem [shape: f32[2,784], index: 0, kind: input, shape index: {}]
  %s1 = inlined_call_operand.vmem [shape: bf16[784,256], index: 1, kind: input, shape index: {}]
  %s2 = inlined_call_operand.vmem [shape: f32[1,256], index: 2, kind: input, shape index: {}]
  %s3 = inlined_call_operand.vmem [shape: bf16[256,128], index: 3, kind: input, shape index: {}]
  %s4 = inlined_call_operand.vmem [shape: f32[1,128], index: 4, kind: input, shape index: {}]
  %s5 = inlined_call_operand.vmem [shape: bf16[128,128], index: 5, kind: input, shape index: {}]
  %s6 = inlined_call_operand.vmem [shape: f32[1,128], index: 6, kind: input, shape index: {}]
  %s7 = inlined_call_operand.vmem [shape: bf16[2,128], index: 7, kind: output, shape index: {}]
  %s8 = sld [smem:[#allocation0]]
  $region68: #{mlp_forward.1} parent=0
    _
  %s10 = ssub.s32 1, %s8
  %s11 = scalar_select 0, %s10, %s8
  $region1: #{mlp_forward.1} parent=0
    #allocation2 [shape = 'u8[32768]{0}', space=vmem, size = 0x8000, scoped, tag = 'output window, operand 0, single buffered']
    // Predicated region
    $region2: #{mlp_forward.1} parent=1 // pred_check
      _
    $region3: #{mlp_forward.1} parent=1 // pred_check_branch
      %13 = sbr.rel (0) target = $region5
    $region4: #{mlp_forward.1} parent=1 // pred_region
      _
    $region5: #{mlp_forward.1} parent=1 // pred_fallthru
      _
    // Predicated region
    $region6: #{mlp_forward.1} parent=1 // pred_check
      _
    $region7: #{mlp_forward.1} parent=1 // pred_check_branch
      %15 = sbr.rel (0) target = $region9
    $region8: #{mlp_forward.1} parent=1 // pred_region
      _
    $region9: #{mlp_forward.1} parent=1 // pred_fallthru
      _
    // Predicated region
    $region10: #{mlp_forward.1} parent=1 // pred_check
      _
    $region11: #{mlp_forward.1} parent=1 // pred_check_branch
      %17 = sbr.rel (0) target = $region13
    $region12: #{mlp_forward.1} parent=1 // pred_region
      _
    $region13: #{mlp_forward.1} parent=1 // pred_fallthru
      _
    // Predicated region
    $region14: #{mlp_forward.1} parent=1 // pred_check
      _
    $region15: #{mlp_forward.1} parent=1 // pred_check_branch
      %19 = sbr.rel (0) target = $region17
    $region16: #{mlp_forward.1} parent=1 // pred_region
      _
    $region17: #{mlp_forward.1} parent=1 // pred_fallthru
      _
    // Predicated region
    $region18: #{mlp_forward.1} parent=1 // pred_check
      _
    $region19: #{mlp_forward.1} parent=1 // pred_check_branch
      %21 = sbr.rel (0) target = $region21
    $region20: #{mlp_forward.1} parent=1 // pred_region
      _
    $region21: #{mlp_forward.1} parent=1 // pred_fallthru
      _
    // Predicated region
    $region22: #{mlp_forward.1} parent=1 // pred_check
      _
    $region23: #{mlp_forward.1} parent=1 // pred_check_branch
      %23 = sbr.rel (0) target = $region25
    $region24: #{mlp_forward.1} parent=1 // pred_region
      _
    $region25: #{mlp_forward.1} parent=1 // pred_fallthru
      _
    // Predicated region
    $region26: #{mlp_forward.1} parent=1 // pred_check
      _
    $region27: #{mlp_forward.1} parent=1 // pred_check_branch
      %25 = sbr.rel (0) target = $region29
    $region28: #{mlp_forward.1} parent=1 // pred_region
      _
    $region29: #{mlp_forward.1} parent=1 // pred_fallthru
      _
    %v27 = vld [vmem:[%s0] sm:$0xff]
    %v28 = vld [vmem:[%s0 + $0x8] sm:$0x3f]
    %v29 = vld [vmem:[%s0 + $0xe] sm:$0xff]
    %v30 = vld [vmem:[%s0 + $0x16] sm:$0x3f]
    %v31 = vld [vmem:[%s0 + $0x1c] sm:$0xff]
    %v32 = vld [vmem:[%s0 + $0x24] sm:$0x3f]
    %v33 = vld [vmem:[%s0 + $0x2a] sm:$0xff]
    %v34 = vld [vmem:[%s0 + $0x32] sm:$0x3f]
    %v35 = vld [vmem:[%s0 + $0x38] sm:$0xff]
    %v36 = vld [vmem:[%s0 + $0x40] sm:$0x3f]
    %v37 = vld [vmem:[%s0 + $0x46] sm:$0xff]
    %v38 = vld [vmem:[%s0 + $0x4e] sm:$0x3f]
    %v39 = vld [vmem:[%s0 + $0x54] sm:$0xff]
    %v40 = vld [vmem:[%s0 + $0x5c] sm:$0x3f]
    %v41 = vld [vmem:[%s0 + $0x62] sm:$0xff]
    %v42 = vld [vmem:[%s0 + $0x6a] sm:$0x3f]
    %v43 = vld [vmem:[%s0 + $0x70] sm:$0xff]
    %v44 = vld [vmem:[%s0 + $0x78] sm:$0x3f]
    %v45 = vld [vmem:[%s0 + $0x7e] sm:$0xff]
    %v46 = vld [vmem:[%s0 + $0x86] sm:$0x3f]
    %v47 = vld [vmem:[%s0 + $0x8c] sm:$0xff]
    %v48 = vld [vmem:[%s0 + $0x94] sm:$0x3f]
    %v49 = vld [vmem:[%s0 + $0x9a] sm:$0xff]
    %v50 = vld [vmem:[%s0 + $0xa2] sm:$0x3f]
    %v51 = vld [vmem:[%s0 + $0xa8] sm:$0xff]
    %v52 = vld [vmem:[%s0 + $0xb0] sm:$0x3f]
    %v53 = vld [vmem:[%s0 + $0xb6] sm:$0xff]
    %v54 = vld [vmem:[%s0 + $0xbe] sm:$0x3f]
    %v55 = vld [vmem:[%s0 + $0xc4] sm:$0xff]
    %v56 = vld [vmem:[%s0 + $0xcc] sm:$0x3f]
    %v57 = vld [vmem:[%s0 + $0xd2] sm:$0xff]
    %v58 = vld [vmem:[%s0 + $0xda] sm:$0x3f]
    %v59 = vld [vmem:[%s0 + $0xe0] sm:$0xff]
    %v60 = vld [vmem:[%s0 + $0xe8] sm:$0x3f]
    %v61 = vld [vmem:[%s0 + $0xee] sm:$0xff]
    %v62 = vld [vmem:[%s0 + $0xf6] sm:$0x3f]
    %v63 = vld [vmem:[%s0 + $0xfc] sm:$0xff]
    %v64 = vld [vmem:[%s0 + $0x104] sm:$0x3f]
    %v65 = vld [vmem:[%s0 + $0x10a] sm:$0xff]
    %v66 = vld [vmem:[%s0 + $0x112] sm:$0x3f]
    %v67 = vld [vmem:[%s0 + $0x118] sm:$0xff]
    %v68 = vld [vmem:[%s0 + $0x120] sm:$0x3f]
    %v69 = vld [vmem:[%s0 + $0x126] sm:$0xff]
    %v70 = vld [vmem:[%s0 + $0x12e] sm:$0x3f]
    %v71 = vld [vmem:[%s0 + $0x134] sm:$0xff]
    %v72 = vld [vmem:[%s0 + $0x13c] sm:$0x3f]
    %v73 = vld [vmem:[%s0 + $0x142] sm:$0xff]
    %v74 = vld [vmem:[%s0 + $0x14a] sm:$0x3f]
    %v75 = vld [vmem:[%s0 + $0x150] sm:$0xff]
    %v76 = vld [vmem:[%s0 + $0x158] sm:$0x3f]
    %v77 = vld [vmem:[%s0 + $0x15e] sm:$0xff]
    %v78 = vld [vmem:[%s0 + $0x166] sm:$0x3f]
    %v79 = vld [vmem:[%s0 + $0x16c] sm:$0xff]
    %v80 = vld [vmem:[%s0 + $0x174] sm:$0x3f]
    %v81 = vld [vmem:[%s0 + $0x17a] sm:$0xff]
    %v82 = vld [vmem:[%s0 + $0x182] sm:$0x3f]
    %v83 = vld [vmem:[%s0 + $0x188] sm:$0xff]
    %v84 = vld [vmem:[%s0 + $0x190] sm:$0x3f]
    %v85 = vld [vmem:[%s0 + $0x196] sm:$0xff]
    %v86 = vld [vmem:[%s0 + $0x19e] sm:$0x3f]
    %v87 = vld [vmem:[%s0 + $0x1a4] sm:$0xff]
    %v88 = vld [vmem:[%s0 + $0x1ac] sm:$0x3f]
    %v89 = vld [vmem:[%s0 + $0x1b2] sm:$0xff]
    %v90 = vld [vmem:[%s0 + $0x1ba] sm:$0x3f]
    %v91 = vld [vmem:[%s0 + $0x1c0] sm:$0xff]
    %v92 = vld [vmem:[%s0 + $0x1c8] sm:$0x3f]
    %v93 = vld [vmem:[%s0 + $0x1ce] sm:$0xff]
    %v94 = vld [vmem:[%s0 + $0x1d6] sm:$0x3f]
    %v95 = vld [vmem:[%s0 + $0x1dc] sm:$0xff]
    %v96 = vld [vmem:[%s0 + $0x1e4] sm:$0x3f]
    %v97 = vld [vmem:[%s0 + $0x1ea] sm:$0xff]
    %v98 = vld [vmem:[%s0 + $0x1f2] sm:$0x3f]
    %v99 = vld [vmem:[%s0 + $0x1f8] sm:$0xff]
    %v100 = vld [vmem:[%s0 + $0x200] sm:$0x3f]
    %v101 = vld [vmem:[%s0 + $0x206] sm:$0xff]
    %v102 = vld [vmem:[%s0 + $0x20e] sm:$0x3f]
    %v103 = vld [vmem:[%s0 + $0x214] sm:$0xff]
    %v104 = vld [vmem:[%s0 + $0x21c] sm:$0x3f]
    %v105 = vld [vmem:[%s0 + $0x222] sm:$0xff]
    %v106 = vld [vmem:[%s0 + $0x22a] sm:$0x3f]
    %v107 = vld [vmem:[%s0 + $0x230] sm:$0xff]
    %v108 = vld [vmem:[%s0 + $0x238] sm:$0x3f]
    %v109 = vld [vmem:[%s0 + $0x23e] sm:$0xff]
    %v110 = vld [vmem:[%s0 + $0x246] sm:$0x3f]
    %v111 = vld [vmem:[%s0 + $0x24c] sm:$0xff]
    %v112 = vld [vmem:[%s0 + $0x254] sm:$0x3f]
    %v113 = vld [vmem:[%s0 + $0x25a] sm:$0xff]
    %v114 = vld [vmem:[%s0 + $0x262] sm:$0x3f]
    %v115 = vld [vmem:[%s0 + $0x268] sm:$0xff]
    %v116 = vld [vmem:[%s0 + $0x270] sm:$0x3f]
    %v117 = vld [vmem:[%s0 + $0x276] sm:$0xff]
    %v118 = vld [vmem:[%s0 + $0x27e] sm:$0x3f]
    %v119 = vld [vmem:[%s0 + $0x284] sm:$0xff]
    %v120 = vld [vmem:[%s0 + $0x28c] sm:$0x3f]
    %v121 = vld [vmem:[%s0 + $0x292] sm:$0xff]
    %v122 = vld [vmem:[%s0 + $0x29a] sm:$0x3f]
    %v123 = vld [vmem:[%s0 + $0x2a0] sm:$0xff]
    %v124 = vld [vmem:[%s0 + $0x2a8] sm:$0x3f]
    %v125 = vld [vmem:[%s0 + $0x2ae] sm:$0xff]
    %v126 = vld [vmem:[%s0 + $0x2b6] sm:$0x3f]
    %v127 = vld [vmem:[%s0 + $0x2bc] sm:$0xff]
    %v128 = vld [vmem:[%s0 + $0x2c4] sm:$0x3f]
    %v129 = vld [vmem:[%s0 + $0x2ca] sm:$0xff]
    %v130 = vld [vmem:[%s0 + $0x2d2] sm:$0x3f]
    %v131 = vld [vmem:[%s0 + $0x2d8] sm:$0xff]
    %v132 = vld [vmem:[%s0 + $0x2e0] sm:$0x3f]
    %v133 = vld [vmem:[%s0 + $0x2e6] sm:$0xff]
    %v134 = vld [vmem:[%s0 + $0x2ee] sm:$0x3f]
    %v135 = vld [vmem:[%s0 + $0x2f4] sm:$0xff]
    %v136 = vld [vmem:[%s0 + $0x2fc] sm:$0x3f]
    %v137 = vld [vmem:[%s0 + $0x302] sm:$0xff]
    %v138 = vld [vmem:[%s0 + $0x30a] sm:$0x3f]
    %v139 = vld [vmem:[%s0 + $0x310] sm:$0xff]
    %v140 = vld [vmem:[%s0 + $0x318] sm:$0x3f]
    %v141 = vld [vmem:[%s0 + $0x31e] sm:$0xff]
    %v142 = vld [vmem:[%s0 + $0x326] sm:$0x3f]
    %v143 = vld [vmem:[%s0 + $0x32c] sm:$0xff]
    %v144 = vld [vmem:[%s0 + $0x334] sm:$0x3f]
    %v145 = vld [vmem:[%s0 + $0x33a] sm:$0xff]
    %v146 = vld [vmem:[%s0 + $0x342] sm:$0x3f]
    %v147 = vld [vmem:[%s0 + $0x348] sm:$0xff]
    %v148 = vld [vmem:[%s0 + $0x350] sm:$0x3f]
    %v149 = vld [vmem:[%s0 + $0x356] sm:$0xff]
    %v150 = vld [vmem:[%s0 + $0x35e] sm:$0x3f]
    %v151 = vld [vmem:[%s0 + $0x364] sm:$0xff]
    %v152 = vld [vmem:[%s0 + $0x36c] sm:$0x3f]
    %v153 = vld [vmem:[%s0 + $0x372] sm:$0xff]
    %v154 = vld [vmem:[%s0 + $0x37a] sm:$0x3f]
    %v283 = vcombine.low %v27, %v29
    %v284 = vcombine.high %v27, %v29
    %v285 = vcombine.low %v31, %v33
    %v286 = vcombine.high %v31, %v33
    %v288 = vunpack.c.l.s4 1983009808
    %v289 = vunpack.c.0.s8 %v288
    %v290 = vlaneseq
    %v291 = vshrl.u32 %v290, 7
    %v292 = vsub.s32 %v289, %v291
    %v293 = vrot.slane %v283, %v292
    %v295 = vunpack.c.l.s4 1983009808
    %v296 = vunpack.c.0.s8 %v295
    %v297 = vlaneseq
    %v298 = vshrl.u32 %v297, 7
    %v299 = vsub.s32 %v296, %v298
    %v300 = vrot.slane %v284, %v299
    %v302 = vunpack.c.l.s4 1983009808
    %v303 = vunpack.c.0.s8 %v302
    %v304 = vlaneseq
    %v305 = vshrl.u32 %v304, 7
    %v306 = vsub.s32 %v303, %v305
    %v307 = vrot.slane %v285, %v306
    %v309 = vunpack.c.l.s4 1983009808
    %v310 = vunpack.c.0.s8 %v309
    %v311 = vlaneseq
    %v312 = vshrl.u32 %v311, 7
    %v313 = vsub.s32 %v310, %v312
    %v314 = vrot.slane %v286, %v313
    %v315 = vcombine.low %v293, %v307
    %v316 = vcombine.high %v293, %v307
    %v317 = vcombine.low %v300, %v314
    %v318 = vcombine.high %v300, %v314
    %v319 = vcombine.low %v28, %v30
    %v320 = vcombine.high %v28, %v30
    %v321 = vcombine.low %v32, %v34
    %v322 = vcombine.high %v32, %v34
    %v324 = vunpack.c.l.s4 1983009808
    %v325 = vunpack.c.0.s8 %v324
    %v326 = vlaneseq
    %v327 = vshrl.u32 %v326, 7
    %v328 = vsub.s32 %v325, %v327
    %v329 = vrot.slane %v319, %v328
    %v331 = vunpack.c.l.s4 1983009808
    %v332 = vunpack.c.0.s8 %v331
    %v333 = vlaneseq
    %v334 = vshrl.u32 %v333, 7
    %v335 = vsub.s32 %v332, %v334
    %v336 = vrot.slane %v320, %v335
    %v338 = vunpack.c.l.s4 1983009808
    %v339 = vunpack.c.0.s8 %v338
    %v340 = vlaneseq
    %v341 = vshrl.u32 %v340, 7
    %v342 = vsub.s32 %v339, %v341
    %v343 = vrot.slane %v321, %v342
    %v345 = vunpack.c.l.s4 1983009808
    %v346 = vunpack.c.0.s8 %v345
    %v347 = vlaneseq
    %v348 = vshrl.u32 %v347, 7
    %v349 = vsub.s32 %v346, %v348
    %v350 = vrot.slane %v322, %v349
    %v351 = vcombine.low %v329, %v343
    %v352 = vcombine.high %v329, %v343
    %v353 = vcombine.low %v336, %v350
    %v354 = vcombine.low %v35, %v37
    %v355 = vcombine.high %v35, %v37
    %v356 = vcombine.low %v39, %v41
    %v357 = vcombine.high %v39, %v41
    %v359 = vunpack.c.l.s4 1983009808
    %v360 = vunpack.c.0.s8 %v359
    %v361 = vlaneseq
    %v362 = vshrl.u32 %v361, 7
    %v363 = vsub.s32 %v360, %v362
    %v364 = vrot.slane %v354, %v363
    %v366 = vunpack.c.l.s4 1983009808
    %v367 = vunpack.c.0.s8 %v366
    %v368 = vlaneseq
    %v369 = vshrl.u32 %v368, 7
    %v370 = vsub.s32 %v367, %v369
    %v371 = vrot.slane %v355, %v370
    %v373 = vunpack.c.l.s4 1983009808
    %v374 = vunpack.c.0.s8 %v373
    %v375 = vlaneseq
    %v376 = vshrl.u32 %v375, 7
    %v377 = vsub.s32 %v374, %v376
    %v378 = vrot.slane %v356, %v377
    %v380 = vunpack.c.l.s4 1983009808
    %v381 = vunpack.c.0.s8 %v380
    %v382 = vlaneseq
    %v383 = vshrl.u32 %v382, 7
    %v384 = vsub.s32 %v381, %v383
    %v385 = vrot.slane %v357, %v384
    %v386 = vcombine.low %v364, %v378
    %v387 = vcombine.high %v364, %v378
    %v388 = vcombine.low %v371, %v385
    %v389 = vcombine.high %v371, %v385
    %v390 = vcombine.low %v36, %v38
    %v391 = vcombine.high %v36, %v38
    %v392 = vcombine.low %v40, %v42
    %v393 = vcombine.high %v40, %v42
    %v395 = vunpack.c.l.s4 1983009808
    %v396 = vunpack.c.0.s8 %v395
    %v397 = vlaneseq
    %v398 = vshrl.u32 %v397, 7
    %v399 = vsub.s32 %v396, %v398
    %v400 = vrot.slane %v390, %v399
    %v402 = vunpack.c.l.s4 1983009808
    %v403 = vunpack.c.0.s8 %v402
    %v404 = vlaneseq
    %v405 = vshrl.u32 %v404, 7
    %v406 = vsub.s32 %v403, %v405
    %v407 = vrot.slane %v391, %v406
    %v409 = vunpack.c.l.s4 1983009808
    %v410 = vunpack.c.0.s8 %v409
    %v411 = vlaneseq
    %v412 = vshrl.u32 %v411, 7
    %v413 = vsub.s32 %v410, %v412
    %v414 = vrot.slane %v392, %v413
    %v416 = vunpack.c.l.s4 1983009808
    %v417 = vunpack.c.0.s8 %v416
    %v418 = vlaneseq
    %v419 = vshrl.u32 %v418, 7
    %v420 = vsub.s32 %v417, %v419
    %v421 = vrot.slane %v393, %v420
    %v422 = vcombine.low %v400, %v414
    %v423 = vcombine.high %v400, %v414
    %v424 = vcombine.low %v407, %v421
    %v425 = vcombine.low %v43, %v45
    %v426 = vcombine.high %v43, %v45
    %v427 = vcombine.low %v47, %v49
    %v428 = vcombine.high %v47, %v49
    %v430 = vunpack.c.l.s4 1983009808
    %v431 = vunpack.c.0.s8 %v430
    %v432 = vlaneseq
    %v433 = vshrl.u32 %v432, 7
    %v434 = vsub.s32 %v431, %v433
    %v435 = vrot.slane %v425, %v434
    %v437 = vunpack.c.l.s4 1983009808
    %v438 = vunpack.c.0.s8 %v437
    %v439 = vlaneseq
    %v440 = vshrl.u32 %v439, 7
    %v441 = vsub.s32 %v438, %v440
    %v442 = vrot.slane %v426, %v441
    %v444 = vunpack.c.l.s4 1983009808
    %v445 = vunpack.c.0.s8 %v444
    %v446 = vlaneseq
    %v447 = vshrl.u32 %v446, 7
    %v448 = vsub.s32 %v445, %v447
    %v449 = vrot.slane %v427, %v448
    %v451 = vunpack.c.l.s4 1983009808
    %v452 = vunpack.c.0.s8 %v451
    %v453 = vlaneseq
    %v454 = vshrl.u32 %v453, 7
    %v455 = vsub.s32 %v452, %v454
    %v456 = vrot.slane %v428, %v455
    %v457 = vcombine.low %v435, %v449
    %v458 = vcombine.high %v435, %v449
    %v459 = vcombine.low %v442, %v456
    %v460 = vcombine.high %v442, %v456
    %v461 = vcombine.low %v44, %v46
    %v462 = vcombine.high %v44, %v46
    %v463 = vcombine.low %v48, %v50
    %v464 = vcombine.high %v48, %v50
    %v466 = vunpack.c.l.s4 1983009808
    %v467 = vunpack.c.0.s8 %v466
    %v468 = vlaneseq
    %v469 = vshrl.u32 %v468, 7
    %v470 = vsub.s32 %v467, %v469
    %v471 = vrot.slane %v461, %v470
    %v473 = vunpack.c.l.s4 1983009808
    %v474 = vunpack.c.0.s8 %v473
    %v475 = vlaneseq
    %v476 = vshrl.u32 %v475, 7
    %v477 = vsub.s32 %v474, %v476
    %v478 = vrot.slane %v462, %v477
    %v480 = vunpack.c.l.s4 1983009808
    %v481 = vunpack.c.0.s8 %v480
    %v482 = vlaneseq
    %v483 = vshrl.u32 %v482, 7
    %v484 = vsub.s32 %v481, %v483
    %v485 = vrot.slane %v463, %v484
    %v487 = vunpack.c.l.s4 1983009808
    %v488 = vunpack.c.0.s8 %v487
    %v489 = vlaneseq
    %v490 = vshrl.u32 %v489, 7
    %v491 = vsub.s32 %v488, %v490
    %v492 = vrot.slane %v464, %v491
    %v493 = vcombine.low %v471, %v485
    %v494 = vcombine.high %v471, %v485
    %v495 = vcombine.low %v478, %v492
    %v496 = vcombine.low %v51, %v53
    %v497 = vcombine.high %v51, %v53
    %v498 = vcombine.low %v55, %v57
    %v499 = vcombine.high %v55, %v57
    %v501 = vunpack.c.l.s4 1983009808
    %v502 = vunpack.c.0.s8 %v501
    %v503 = vlaneseq
    %v504 = vshrl.u32 %v503, 7
    %v505 = vsub.s32 %v502, %v504
    %v506 = vrot.slane %v496, %v505
    %v508 = vunpack.c.l.s4 1983009808
    %v509 = vunpack.c.0.s8 %v508
    %v510 = vlaneseq
    %v511 = vshrl.u32 %v510, 7
    %v512 = vsub.s32 %v509, %v511
    %v513 = vrot.slane %v497, %v512
    %v515 = vunpack.c.l.s4 1983009808
    %v516 = vunpack.c.0.s8 %v515
    %v517 = vlaneseq
    %v518 = vshrl.u32 %v517, 7
    %v519 = vsub.s32 %v516, %v518
    %v520 = vrot.slane %v498, %v519
    %v522 = vunpack.c.l.s4 1983009808
    %v523 = vunpack.c.0.s8 %v522
    %v524 = vlaneseq
    %v525 = vshrl.u32 %v524, 7
    %v526 = vsub.s32 %v523, %v525
    %v527 = vrot.slane %v499, %v526
    %v528 = vcombine.low %v506, %v520
    %v529 = vcombine.high %v506, %v520
    %v530 = vcombine.low %v513, %v527
    %v531 = vcombine.high %v513, %v527
    %v532 = vcombine.low %v52, %v54
    %v533 = vcombine.high %v52, %v54
    %v534 = vcombine.low %v56, %v58
    %v535 = vcombine.high %v56, %v58
    %v537 = vunpack.c.l.s4 1983009808
    %v538 = vunpack.c.0.s8 %v537
    %v539 = vlaneseq
    %v540 = vshrl.u32 %v539, 7
    %v541 = vsub.s32 %v538, %v540
    %v542 = vrot.slane %v532, %v541
    %v544 = vunpack.c.l.s4 1983009808
    %v545 = vunpack.c.0.s8 %v544
    %v546 = vlaneseq
    %v547 = vshrl.u32 %v546, 7
    %v548 = vsub.s32 %v545, %v547
    %v549 = vrot.slane %v533, %v548
    %v551 = vunpack.c.l.s4 1983009808
    %v552 = vunpack.c.0.s8 %v551
    %v553 = vlaneseq
    %v554 = vshrl.u32 %v553, 7
    %v555 = vsub.s32 %v552, %v554
    %v556 = vrot.slane %v534, %v555
    %v558 = vunpack.c.l.s4 1983009808
    %v559 = vunpack.c.0.s8 %v558
    %v560 = vlaneseq
    %v561 = vshrl.u32 %v560, 7
    %v562 = vsub.s32 %v559, %v561
    %v563 = vrot.slane %v535, %v562
    %v564 = vcombine.low %v542, %v556
    %v565 = vcombine.high %v542, %v556
    %v566 = vcombine.low %v549, %v563
    %v567 = vcombine.low %v59, %v61
    %v568 = vcombine.high %v59, %v61
    %v569 = vcombine.low %v63, %v65
    %v570 = vcombine.high %v63, %v65
    %v572 = vunpack.c.l.s4 1983009808
    %v573 = vunpack.c.0.s8 %v572
    %v574 = vlaneseq
    %v575 = vshrl.u32 %v574, 7
    %v576 = vsub.s32 %v573, %v575
    %v577 = vrot.slane %v567, %v576
    %v579 = vunpack.c.l.s4 1983009808
    %v580 = vunpack.c.0.s8 %v579
    %v581 = vlaneseq
    %v582 = vshrl.u32 %v581, 7
    %v583 = vsub.s32 %v580, %v582
    %v584 = vrot.slane %v568, %v583
    %v586 = vunpack.c.l.s4 1983009808
    %v587 = vunpack.c.0.s8 %v586
    %v588 = vlaneseq
    %v589 = vshrl.u32 %v588, 7
    %v590 = vsub.s32 %v587, %v589
    %v591 = vrot.slane %v569, %v590
    %v593 = vunpack.c.l.s4 1983009808
    %v594 = vunpack.c.0.s8 %v593
    %v595 = vlaneseq
    %v596 = vshrl.u32 %v595, 7
    %v597 = vsub.s32 %v594, %v596
    %v598 = vrot.slane %v570, %v597
    %v599 = vcombine.low %v577, %v591
    %v600 = vcombine.high %v577, %v591
    %v601 = vcombine.low %v584, %v598
    %v602 = vcombine.high %v584, %v598
    %v603 = vcombine.low %v60, %v62
    %v604 = vcombine.high %v60, %v62
    %v605 = vcombine.low %v64, %v66
    %v606 = vcombine.high %v64, %v66
    %v608 = vunpack.c.l.s4 1983009808
    %v609 = vunpack.c.0.s8 %v608
    %v610 = vlaneseq
    %v611 = vshrl.u32 %v610, 7
    %v612 = vsub.s32 %v609, %v611
    %v613 = vrot.slane %v603, %v612
    %v615 = vunpack.c.l.s4 1983009808
    %v616 = vunpack.c.0.s8 %v615
    %v617 = vlaneseq
    %v618 = vshrl.u32 %v617, 7
    %v619 = vsub.s32 %v616, %v618
    %v620 = vrot.slane %v604, %v619
    %v622 = vunpack.c.l.s4 1983009808
    %v623 = vunpack.c.0.s8 %v622
    %v624 = vlaneseq
    %v625 = vshrl.u32 %v624, 7
    %v626 = vsub.s32 %v623, %v625
    %v627 = vrot.slane %v605, %v626
    %v629 = vunpack.c.l.s4 1983009808
    %v630 = vunpack.c.0.s8 %v629
    %v631 = vlaneseq
    %v632 = vshrl.u32 %v631, 7
    %v633 = vsub.s32 %v630, %v632
    %v634 = vrot.slane %v606, %v633
    %v635 = vcombine.low %v613, %v627
    %v636 = vcombine.high %v613, %v627
    %v637 = vcombine.low %v620, %v634
    %v638 = vcombine.low %v67, %v69
    %v639 = vcombine.high %v67, %v69
    %v640 = vcombine.low %v71, %v73
    %v641 = vcombine.high %v71, %v73
    %v643 = vunpack.c.l.s4 1983009808
    %v644 = vunpack.c.0.s8 %v643
    %v645 = vlaneseq
    %v646 = vshrl.u32 %v645, 7
    %v647 = vsub.s32 %v644, %v646
    %v648 = vrot.slane %v638, %v647
    %v650 = vunpack.c.l.s4 1983009808
    %v651 = vunpack.c.0.s8 %v650
    %v652 = vlaneseq
    %v653 = vshrl.u32 %v652, 7
    %v654 = vsub.s32 %v651, %v653
    %v655 = vrot.slane %v639, %v654
    %v657 = vunpack.c.l.s4 1983009808
    %v658 = vunpack.c.0.s8 %v657
    %v659 = vlaneseq
    %v660 = vshrl.u32 %v659, 7
    %v661 = vsub.s32 %v658, %v660
    %v662 = vrot.slane %v640, %v661
    %v664 = vunpack.c.l.s4 1983009808
    %v665 = vunpack.c.0.s8 %v664
    %v666 = vlaneseq
    %v667 = vshrl.u32 %v666, 7
    %v668 = vsub.s32 %v665, %v667
    %v669 = vrot.slane %v641, %v668
    %v670 = vcombine.low %v648, %v662
    %v671 = vcombine.high %v648, %v662
    %v672 = vcombine.low %v655, %v669
    %v673 = vcombine.high %v655, %v669
    %v674 = vcombine.low %v68, %v70
    %v675 = vcombine.high %v68, %v70
    %v676 = vcombine.low %v72, %v74
    %v677 = vcombine.high %v72, %v74
    %v679 = vunpack.c.l.s4 1983009808
    %v680 = vunpack.c.0.s8 %v679
    %v681 = vlaneseq
    %v682 = vshrl.u32 %v681, 7
    %v683 = vsub.s32 %v680, %v682
    %v684 = vrot.slane %v674, %v683
    %v686 = vunpack.c.l.s4 1983009808
    %v687 = vunpack.c.0.s8 %v686
    %v688 = vlaneseq
    %v689 = vshrl.u32 %v688, 7
    %v690 = vsub.s32 %v687, %v689
    %v691 = vrot.slane %v675, %v690
    %v693 = vunpack.c.l.s4 1983009808
    %v694 = vunpack.c.0.s8 %v693
    %v695 = vlaneseq
    %v696 = vshrl.u32 %v695, 7
    %v697 = vsub.s32 %v694, %v696
    %v698 = vrot.slane %v676, %v697
    %v700 = vunpack.c.l.s4 1983009808
    %v701 = vunpack.c.0.s8 %v700
    %v702 = vlaneseq
    %v703 = vshrl.u32 %v702, 7
    %v704 = vsub.s32 %v701, %v703
    %v705 = vrot.slane %v677, %v704
    %v706 = vcombine.low %v684, %v698
    %v707 = vcombine.high %v684, %v698
    %v708 = vcombine.low %v691, %v705
    %v709 = vcombine.low %v75, %v77
    %v710 = vcombine.high %v75, %v77
    %v711 = vcombine.low %v79, %v81
    %v712 = vcombine.high %v79, %v81
    %v714 = vunpack.c.l.s4 1983009808
    %v715 = vunpack.c.0.s8 %v714
    %v716 = vlaneseq
    %v717 = vshrl.u32 %v716, 7
    %v718 = vsub.s32 %v715, %v717
    %v719 = vrot.slane %v709, %v718
    %v721 = vunpack.c.l.s4 1983009808
    %v722 = vunpack.c.0.s8 %v721
    %v723 = vlaneseq
    %v724 = vshrl.u32 %v723, 7
    %v725 = vsub.s32 %v722, %v724
    %v726 = vrot.slane %v710, %v725
    %v728 = vunpack.c.l.s4 1983009808
    %v729 = vunpack.c.0.s8 %v728
    %v730 = vlaneseq
    %v731 = vshrl.u32 %v730, 7
    %v732 = vsub.s32 %v729, %v731
    %v733 = vrot.slane %v711, %v732
    %v735 = vunpack.c.l.s4 1983009808
    %v736 = vunpack.c.0.s8 %v735
    %v737 = vlaneseq
    %v738 = vshrl.u32 %v737, 7
    %v739 = vsub.s32 %v736, %v738
    %v740 = vrot.slane %v712, %v739
    %v741 = vcombine.low %v719, %v733
    %v742 = vcombine.high %v719, %v733
    %v743 = vcombine.low %v726, %v740
    %v744 = vcombine.high %v726, %v740
    %v745 = vcombine.low %v76, %v78
    %v746 = vcombine.high %v76, %v78
    %v747 = vcombine.low %v80, %v82
    %v748 = vcombine.high %v80, %v82
    %v750 = vunpack.c.l.s4 1983009808
    %v751 = vunpack.c.0.s8 %v750
    %v752 = vlaneseq
    %v753 = vshrl.u32 %v752, 7
    %v754 = vsub.s32 %v751, %v753
    %v755 = vrot.slane %v745, %v754
    %v757 = vunpack.c.l.s4 1983009808
    %v758 = vunpack.c.0.s8 %v757
    %v759 = vlaneseq
    %v760 = vshrl.u32 %v759, 7
    %v761 = vsub.s32 %v758, %v760
    %v762 = vrot.slane %v746, %v761
    %v764 = vunpack.c.l.s4 1983009808
    %v765 = vunpack.c.0.s8 %v764
    %v766 = vlaneseq
    %v767 = vshrl.u32 %v766, 7
    %v768 = vsub.s32 %v765, %v767
    %v769 = vrot.slane %v747, %v768
    %v771 = vunpack.c.l.s4 1983009808
    %v772 = vunpack.c.0.s8 %v771
    %v773 = vlaneseq
    %v774 = vshrl.u32 %v773, 7
    %v775 = vsub.s32 %v772, %v774
    %v776 = vrot.slane %v748, %v775
    %v777 = vcombine.low %v755, %v769
    %v778 = vcombine.high %v755, %v769
    %v779 = vcombine.low %v762, %v776
    %v780 = vcombine.low %v83, %v85
    %v781 = vcombine.high %v83, %v85
    %v782 = vcombine.low %v87, %v89
    %v783 = vcombine.high %v87, %v89
    %v785 = vunpack.c.l.s4 1983009808
    %v786 = vunpack.c.0.s8 %v785
    %v787 = vlaneseq
    %v788 = vshrl.u32 %v787, 7
    %v789 = vsub.s32 %v786, %v788
    %v790 = vrot.slane %v780, %v789
    %v792 = vunpack.c.l.s4 1983009808
    %v793 = vunpack.c.0.s8 %v792
    %v794 = vlaneseq
    %v795 = vshrl.u32 %v794, 7
    %v796 = vsub.s32 %v793, %v795
    %v797 = vrot.slane %v781, %v796
    %v799 = vunpack.c.l.s4 1983009808
    %v800 = vunpack.c.0.s8 %v799
    %v801 = vlaneseq
    %v802 = vshrl.u32 %v801, 7
    %v803 = vsub.s32 %v800, %v802
    %v804 = vrot.slane %v782, %v803
    %v806 = vunpack.c.l.s4 1983009808
    %v807 = vunpack.c.0.s8 %v806
    %v808 = vlaneseq
    %v809 = vshrl.u32 %v808, 7
    %v810 = vsub.s32 %v807, %v809
    %v811 = vrot.slane %v783, %v810
    %v812 = vcombine.low %v790, %v804
    %v813 = vcombine.high %v790, %v804
    %v814 = vcombine.low %v797, %v811
    %v815 = vcombine.high %v797, %v811
    %v816 = vcombine.low %v84, %v86
    %v817 = vcombine.high %v84, %v86
    %v818 = vcombine.low %v88, %v90
    %v819 = vcombine.high %v88, %v90
    %v821 = vunpack.c.l.s4 1983009808
    %v822 = vunpack.c.0.s8 %v821
    %v823 = vlaneseq
    %v824 = vshrl.u32 %v823, 7
    %v825 = vsub.s32 %v822, %v824
    %v826 = vrot.slane %v816, %v825
    %v828 = vunpack.c.l.s4 1983009808
    %v829 = vunpack.c.0.s8 %v828
    %v830 = vlaneseq
    %v831 = vshrl.u32 %v830, 7
    %v832 = vsub.s32 %v829, %v831
    %v833 = vrot.slane %v817, %v832
    %v835 = vunpack.c.l.s4 1983009808
    %v836 = vunpack.c.0.s8 %v835
    %v837 = vlaneseq
    %v838 = vshrl.u32 %v837, 7
    %v839 = vsub.s32 %v836, %v838
    %v840 = vrot.slane %v818, %v839
    %v842 = vunpack.c.l.s4 1983009808
    %v843 = vunpack.c.0.s8 %v842
    %v844 = vlaneseq
    %v845 = vshrl.u32 %v844, 7
    %v846 = vsub.s32 %v843, %v845
    %v847 = vrot.slane %v819, %v846
    %v848 = vcombine.low %v826, %v840
    %v849 = vcombine.high %v826, %v840
    %v850 = vcombine.low %v833, %v847
    %v851 = vcombine.low %v91, %v93
    %v852 = vcombine.high %v91, %v93
    %v853 = vcombine.low %v95, %v97
    %v854 = vcombine.high %v95, %v97
    %v856 = vunpack.c.l.s4 1983009808
    %v857 = vunpack.c.0.s8 %v856
    %v858 = vlaneseq
    %v859 = vshrl.u32 %v858, 7
    %v860 = vsub.s32 %v857, %v859
    %v861 = vrot.slane %v851, %v860
    %v863 = vunpack.c.l.s4 1983009808
    %v864 = vunpack.c.0.s8 %v863
    %v865 = vlaneseq
    %v866 = vshrl.u32 %v865, 7
    %v867 = vsub.s32 %v864, %v866
    %v868 = vrot.slane %v852, %v867
    %v870 = vunpack.c.l.s4 1983009808
    %v871 = vunpack.c.0.s8 %v870
    %v872 = vlaneseq
    %v873 = vshrl.u32 %v872, 7
    %v874 = vsub.s32 %v871, %v873
    %v875 = vrot.slane %v853, %v874
    %v877 = vunpack.c.l.s4 1983009808
    %v878 = vunpack.c.0.s8 %v877
    %v879 = vlaneseq
    %v880 = vshrl.u32 %v879, 7
    %v881 = vsub.s32 %v878, %v880
    %v882 = vrot.slane %v854, %v881
    %v883 = vcombine.low %v861, %v875
    %v884 = vcombine.high %v861, %v875
    %v885 = vcombine.low %v868, %v882
    %v886 = vcombine.high %v868, %v882
    %v887 = vcombine.low %v92, %v94
    %v888 = vcombine.high %v92, %v94
    %v889 = vcombine.low %v96, %v98
    %v890 = vcombine.high %v96, %v98
    %v892 = vunpack.c.l.s4 1983009808
    %v893 = vunpack.c.0.s8 %v892
    %v894 = vlaneseq
    %v895 = vshrl.u32 %v894, 7
    %v896 = vsub.s32 %v893, %v895
    %v897 = vrot.slane %v887, %v896
    %v899 = vunpack.c.l.s4 1983009808
    %v900 = vunpack.c.0.s8 %v899
    %v901 = vlaneseq
    %v902 = vshrl.u32 %v901, 7
    %v903 = vsub.s32 %v900, %v902
    %v904 = vrot.slane %v888, %v903
    %v906 = vunpack.c.l.s4 1983009808
    %v907 = vunpack.c.0.s8 %v906
    %v908 = vlaneseq
    %v909 = vshrl.u32 %v908, 7
    %v910 = vsub.s32 %v907, %v909
    %v911 = vrot.slane %v889, %v910
    %v913 = vunpack.c.l.s4 1983009808
    %v914 = vunpack.c.0.s8 %v913
    %v915 = vlaneseq
    %v916 = vshrl.u32 %v915, 7
    %v917 = vsub.s32 %v914, %v916
    %v918 = vrot.slane %v890, %v917
    %v919 = vcombine.low %v897, %v911
    %v920 = vcombine.high %v897, %v911
    %v921 = vcombine.low %v904, %v918
    %v922 = vcombine.low %v99, %v101
    %v923 = vcombine.high %v99, %v101
    %v924 = vcombine.low %v103, %v105
    %v925 = vcombine.high %v103, %v105
    %v927 = vunpack.c.l.s4 1983009808
    %v928 = vunpack.c.0.s8 %v927
    %v929 = vlaneseq
    %v930 = vshrl.u32 %v929, 7
    %v931 = vsub.s32 %v928, %v930
    %v932 = vrot.slane %v922, %v931
    %v934 = vunpack.c.l.s4 1983009808
    %v935 = vunpack.c.0.s8 %v934
    %v936 = vlaneseq
    %v937 = vshrl.u32 %v936, 7
    %v938 = vsub.s32 %v935, %v937
    %v939 = vrot.slane %v923, %v938
    %v941 = vunpack.c.l.s4 1983009808
    %v942 = vunpack.c.0.s8 %v941
    %v943 = vlaneseq
    %v944 = vshrl.u32 %v943, 7
    %v945 = vsub.s32 %v942, %v944
    %v946 = vrot.slane %v924, %v945
    %v948 = vunpack.c.l.s4 1983009808
    %v949 = vunpack.c.0.s8 %v948
    %v950 = vlaneseq
    %v951 = vshrl.u32 %v950, 7
    %v952 = vsub.s32 %v949, %v951
    %v953 = vrot.slane %v925, %v952
    %v954 = vcombine.low %v932, %v946
    %v955 = vcombine.high %v932, %v946
    %v956 = vcombine.low %v939, %v953
    %v957 = vcombine.high %v939, %v953
    %v958 = vcombine.low %v100, %v102
    %v959 = vcombine.high %v100, %v102
    %v960 = vcombine.low %v104, %v106
    %v961 = vcombine.high %v104, %v106
    %v963 = vunpack.c.l.s4 1983009808
    %v964 = vunpack.c.0.s8 %v963
    %v965 = vlaneseq
    %v966 = vshrl.u32 %v965, 7
    %v967 = vsub.s32 %v964, %v966
    %v968 = vrot.slane %v958, %v967
    %v970 = vunpack.c.l.s4 1983009808
    %v971 = vunpack.c.0.s8 %v970
    %v972 = vlaneseq
    %v973 = vshrl.u32 %v972, 7
    %v974 = vsub.s32 %v971, %v973
    %v975 = vrot.slane %v959, %v974
    %v977 = vunpack.c.l.s4 1983009808
    %v978 = vunpack.c.0.s8 %v977
    %v979 = vlaneseq
    %v980 = vshrl.u32 %v979, 7
    %v981 = vsub.s32 %v978, %v980
    %v982 = vrot.slane %v960, %v981
    %v984 = vunpack.c.l.s4 1983009808
    %v985 = vunpack.c.0.s8 %v984
    %v986 = vlaneseq
    %v987 = vshrl.u32 %v986, 7
    %v988 = vsub.s32 %v985, %v987
    %v989 = vrot.slane %v961, %v988
    %v990 = vcombine.low %v968, %v982
    %v991 = vcombine.high %v968, %v982
    %v992 = vcombine.low %v975, %v989
    %v993 = vcombine.low %v107, %v109
    %v994 = vcombine.high %v107, %v109
    %v995 = vcombine.low %v111, %v113
    %v996 = vcombine.high %v111, %v113
    %v998 = vunpack.c.l.s4 1983009808
    %v999 = vunpack.c.0.s8 %v998
    %v1000 = vlaneseq
    %v1001 = vshrl.u32 %v1000, 7
    %v1002 = vsub.s32 %v999, %v1001
    %v1003 = vrot.slane %v993, %v1002
    %v1005 = vunpack.c.l.s4 1983009808
    %v1006 = vunpack.c.0.s8 %v1005
    %v1007 = vlaneseq
    %v1008 = vshrl.u32 %v1007, 7
    %v1009 = vsub.s32 %v1006, %v1008
    %v1010 = vrot.slane %v994, %v1009
    %v1012 = vunpack.c.l.s4 1983009808
    %v1013 = vunpack.c.0.s8 %v1012
    %v1014 = vlaneseq
    %v1015 = vshrl.u32 %v1014, 7
    %v1016 = vsub.s32 %v1013, %v1015
    %v1017 = vrot.slane %v995, %v1016
    %v1019 = vunpack.c.l.s4 1983009808
    %v1020 = vunpack.c.0.s8 %v1019
    %v1021 = vlaneseq
    %v1022 = vshrl.u32 %v1021, 7
    %v1023 = vsub.s32 %v1020, %v1022
    %v1024 = vrot.slane %v996, %v1023
    %v1025 = vcombine.low %v1003, %v1017
    %v1026 = vcombine.high %v1003, %v1017
    %v1027 = vcombine.low %v1010, %v1024
    %v1028 = vcombine.high %v1010, %v1024
    %v1029 = vcombine.low %v108, %v110
    %v1030 = vcombine.high %v108, %v110
    %v1031 = vcombine.low %v112, %v114
    %v1032 = vcombine.high %v112, %v114
    %v1034 = vunpack.c.l.s4 1983009808
    %v1035 = vunpack.c.0.s8 %v1034
    %v1036 = vlaneseq
    %v1037 = vshrl.u32 %v1036, 7
    %v1038 = vsub.s32 %v1035, %v1037
    %v1039 = vrot.slane %v1029, %v1038
    %v1041 = vunpack.c.l.s4 1983009808
    %v1042 = vunpack.c.0.s8 %v1041
    %v1043 = vlaneseq
    %v1044 = vshrl.u32 %v1043, 7
    %v1045 = vsub.s32 %v1042, %v1044
    %v1046 = vrot.slane %v1030, %v1045
    %v1048 = vunpack.c.l.s4 1983009808
    %v1049 = vunpack.c.0.s8 %v1048
    %v1050 = vlaneseq
    %v1051 = vshrl.u32 %v1050, 7
    %v1052 = vsub.s32 %v1049, %v1051
    %v1053 = vrot.slane %v1031, %v1052
    %v1055 = vunpack.c.l.s4 1983009808
    %v1056 = vunpack.c.0.s8 %v1055
    %v1057 = vlaneseq
    %v1058 = vshrl.u32 %v1057, 7
    %v1059 = vsub.s32 %v1056, %v1058
    %v1060 = vrot.slane %v1032, %v1059
    %v1061 = vcombine.low %v1039, %v1053
    %v1062 = vcombine.high %v1039, %v1053
    %v1063 = vcombine.low %v1046, %v1060
    %v1064 = vcombine.low %v115, %v117
    %v1065 = vcombine.high %v115, %v117
    %v1066 = vcombine.low %v119, %v121
    %v1067 = vcombine.high %v119, %v121
    %v1069 = vunpack.c.l.s4 1983009808
    %v1070 = vunpack.c.0.s8 %v1069
    %v1071 = vlaneseq
    %v1072 = vshrl.u32 %v1071, 7
    %v1073 = vsub.s32 %v1070, %v1072
    %v1074 = vrot.slane %v1064, %v1073
    %v1076 = vunpack.c.l.s4 1983009808
    %v1077 = vunpack.c.0.s8 %v1076
    %v1078 = vlaneseq
    %v1079 = vshrl.u32 %v1078, 7
    %v1080 = vsub.s32 %v1077, %v1079
    %v1081 = vrot.slane %v1065, %v1080
    %v1083 = vunpack.c.l.s4 1983009808
    %v1084 = vunpack.c.0.s8 %v1083
    %v1085 = vlaneseq
    %v1086 = vshrl.u32 %v1085, 7
    %v1087 = vsub.s32 %v1084, %v1086
    %v1088 = vrot.slane %v1066, %v1087
    %v1090 = vunpack.c.l.s4 1983009808
    %v1091 = vunpack.c.0.s8 %v1090
    %v1092 = vlaneseq
    %v1093 = vshrl.u32 %v1092, 7
    %v1094 = vsub.s32 %v1091, %v1093
    %v1095 = vrot.slane %v1067, %v1094
    %v1096 = vcombine.low %v1074, %v1088
    %v1097 = vcombine.high %v1074, %v1088
    %v1098 = vcombine.low %v1081, %v1095
    %v1099 = vcombine.high %v1081, %v1095
    %v1100 = vcombine.low %v116, %v118
    %v1101 = vcombine.high %v116, %v118
    %v1102 = vcombine.low %v120, %v122
    %v1103 = vcombine.high %v120, %v122
    %v1105 = vunpack.c.l.s4 1983009808
    %v1106 = vunpack.c.0.s8 %v1105
    %v1107 = vlaneseq
    %v1108 = vshrl.u32 %v1107, 7
    %v1109 = vsub.s32 %v1106, %v1108
    %v1110 = vrot.slane %v1100, %v1109
    %v1112 = vunpack.c.l.s4 1983009808
    %v1113 = vunpack.c.0.s8 %v1112
    %v1114 = vlaneseq
    %v1115 = vshrl.u32 %v1114, 7
    %v1116 = vsub.s32 %v1113, %v1115
    %v1117 = vrot.slane %v1101, %v1116
    %v1119 = vunpack.c.l.s4 1983009808
    %v1120 = vunpack.c.0.s8 %v1119
    %v1121 = vlaneseq
    %v1122 = vshrl.u32 %v1121, 7
    %v1123 = vsub.s32 %v1120, %v1122
    %v1124 = vrot.slane %v1102, %v1123
    %v1126 = vunpack.c.l.s4 1983009808
    %v1127 = vunpack.c.0.s8 %v1126
    %v1128 = vlaneseq
    %v1129 = vshrl.u32 %v1128, 7
    %v1130 = vsub.s32 %v1127, %v1129
    %v1131 = vrot.slane %v1103, %v1130
    %v1132 = vcombine.low %v1110, %v1124
    %v1133 = vcombine.high %v1110, %v1124
    %v1134 = vcombine.low %v1117, %v1131
    %v1135 = vcombine.low %v123, %v125
    %v1136 = vcombine.high %v123, %v125
    %v1137 = vcombine.low %v127, %v129
    %v1138 = vcombine.high %v127, %v129
    %v1140 = vunpack.c.l.s4 1983009808
    %v1141 = vunpack.c.0.s8 %v1140
    %v1142 = vlaneseq
    %v1143 = vshrl.u32 %v1142, 7
    %v1144 = vsub.s32 %v1141, %v1143
    %v1145 = vrot.slane %v1135, %v1144
    %v1147 = vunpack.c.l.s4 1983009808
    %v1148 = vunpack.c.0.s8 %v1147
    %v1149 = vlaneseq
    %v1150 = vshrl.u32 %v1149, 7
    %v1151 = vsub.s32 %v1148, %v1150
    %v1152 = vrot.slane %v1136, %v1151
    %v1154 = vunpack.c.l.s4 1983009808
    %v1155 = vunpack.c.0.s8 %v1154
    %v1156 = vlaneseq
    %v1157 = vshrl.u32 %v1156, 7
    %v1158 = vsub.s32 %v1155, %v1157
    %v1159 = vrot.slane %v1137, %v1158
    %v1161 = vunpack.c.l.s4 1983009808
    %v1162 = vunpack.c.0.s8 %v1161
    %v1163 = vlaneseq
    %v1164 = vshrl.u32 %v1163, 7
    %v1165 = vsub.s32 %v1162, %v1164
    %v1166 = vrot.slane %v1138, %v1165
    %v1167 = vcombine.low %v1145, %v1159
    %v1168 = vcombine.high %v1145, %v1159
    %v1169 = vcombine.low %v1152, %v1166
    %v1170 = vcombine.high %v1152, %v1166
    %v1171 = vcombine.low %v124, %v126
    %v1172 = vcombine.high %v124, %v126
    %v1173 = vcombine.low %v128, %v130
    %v1174 = vcombine.high %v128, %v130
    %v1176 = vunpack.c.l.s4 1983009808
    %v1177 = vunpack.c.0.s8 %v1176
    %v1178 = vlaneseq
    %v1179 = vshrl.u32 %v1178, 7
    %v1180 = vsub.s32 %v1177, %v1179
    %v1181 = vrot.slane %v1171, %v1180
    %v1183 = vunpack.c.l.s4 1983009808
    %v1184 = vunpack.c.0.s8 %v1183
    %v1185 = vlaneseq
    %v1186 = vshrl.u32 %v1185, 7
    %v1187 = vsub.s32 %v1184, %v1186
    %v1188 = vrot.slane %v1172, %v1187
    %v1190 = vunpack.c.l.s4 1983009808
    %v1191 = vunpack.c.0.s8 %v1190
    %v1192 = vlaneseq
    %v1193 = vshrl.u32 %v1192, 7
    %v1194 = vsub.s32 %v1191, %v1193
    %v1195 = vrot.slane %v1173, %v1194
    %v1197 = vunpack.c.l.s4 1983009808
    %v1198 = vunpack.c.0.s8 %v1197
    %v1199 = vlaneseq
    %v1200 = vshrl.u32 %v1199, 7
    %v1201 = vsub.s32 %v1198, %v1200
    %v1202 = vrot.slane %v1174, %v1201
    %v1203 = vcombine.low %v1181, %v1195
    %v1204 = vcombine.high %v1181, %v1195
    %v1205 = vcombine.low %v1188, %v1202
    %v1206 = vcombine.low %v131, %v133
    %v1207 = vcombine.high %v131, %v133
    %v1208 = vcombine.low %v135, %v137
    %v1209 = vcombine.high %v135, %v137
    %v1211 = vunpack.c.l.s4 1983009808
    %v1212 = vunpack.c.0.s8 %v1211
    %v1213 = vlaneseq
    %v1214 = vshrl.u32 %v1213, 7
    %v1215 = vsub.s32 %v1212, %v1214
    %v1216 = vrot.slane %v1206, %v1215
    %v1218 = vunpack.c.l.s4 1983009808
    %v1219 = vunpack.c.0.s8 %v1218
    %v1220 = vlaneseq
    %v1221 = vshrl.u32 %v1220, 7
    %v1222 = vsub.s32 %v1219, %v1221
    %v1223 = vrot.slane %v1207, %v1222
    %v1225 = vunpack.c.l.s4 1983009808
    %v1226 = vunpack.c.0.s8 %v1225
    %v1227 = vlaneseq
    %v1228 = vshrl.u32 %v1227, 7
    %v1229 = vsub.s32 %v1226, %v1228
    %v1230 = vrot.slane %v1208, %v1229
    %v1232 = vunpack.c.l.s4 1983009808
    %v1233 = vunpack.c.0.s8 %v1232
    %v1234 = vlaneseq
    %v1235 = vshrl.u32 %v1234, 7
    %v1236 = vsub.s32 %v1233, %v1235
    %v1237 = vrot.slane %v1209, %v1236
    %v1238 = vcombine.low %v1216, %v1230
    %v1239 = vcombine.high %v1216, %v1230
    %v1240 = vcombine.low %v1223, %v1237
    %v1241 = vcombine.high %v1223, %v1237
    %v1242 = vcombine.low %v132, %v134
    %v1243 = vcombine.high %v132, %v134
    %v1244 = vcombine.low %v136, %v138
    %v1245 = vcombine.high %v136, %v138
    %v1247 = vunpack.c.l.s4 1983009808
    %v1248 = vunpack.c.0.s8 %v1247
    %v1249 = vlaneseq
    %v1250 = vshrl.u32 %v1249, 7
    %v1251 = vsub.s32 %v1248, %v1250
    %v1252 = vrot.slane %v1242, %v1251
    %v1254 = vunpack.c.l.s4 1983009808
    %v1255 = vunpack.c.0.s8 %v1254
    %v1256 = vlaneseq
    %v1257 = vshrl.u32 %v1256, 7
    %v1258 = vsub.s32 %v1255, %v1257
    %v1259 = vrot.slane %v1243, %v1258
    %v1261 = vunpack.c.l.s4 1983009808
    %v1262 = vunpack.c.0.s8 %v1261
    %v1263 = vlaneseq
    %v1264 = vshrl.u32 %v1263, 7
    %v1265 = vsub.s32 %v1262, %v1264
    %v1266 = vrot.slane %v1244, %v1265
    %v1268 = vunpack.c.l.s4 1983009808
    %v1269 = vunpack.c.0.s8 %v1268
    %v1270 = vlaneseq
    %v1271 = vshrl.u32 %v1270, 7
    %v1272 = vsub.s32 %v1269, %v1271
    %v1273 = vrot.slane %v1245, %v1272
    %v1274 = vcombine.low %v1252, %v1266
    %v1275 = vcombine.high %v1252, %v1266
    %v1276 = vcombine.low %v1259, %v1273
    %v1277 = vcombine.low %v139, %v141
    %v1278 = vcombine.high %v139, %v141
    %v1279 = vcombine.low %v143, %v145
    %v1280 = vcombine.high %v143, %v145
    %v1282 = vunpack.c.l.s4 1983009808
    %v1283 = vunpack.c.0.s8 %v1282
    %v1284 = vlaneseq
    %v1285 = vshrl.u32 %v1284, 7
    %v1286 = vsub.s32 %v1283, %v1285
    %v1287 = vrot.slane %v1277, %v1286
    %v1289 = vunpack.c.l.s4 1983009808
    %v1290 = vunpack.c.0.s8 %v1289
    %v1291 = vlaneseq
    %v1292 = vshrl.u32 %v1291, 7
    %v1293 = vsub.s32 %v1290, %v1292
    %v1294 = vrot.slane %v1278, %v1293
    %v1296 = vunpack.c.l.s4 1983009808
    %v1297 = vunpack.c.0.s8 %v1296
    %v1298 = vlaneseq
    %v1299 = vshrl.u32 %v1298, 7
    %v1300 = vsub.s32 %v1297, %v1299
    %v1301 = vrot.slane %v1279, %v1300
    %v1303 = vunpack.c.l.s4 1983009808
    %v1304 = vunpack.c.0.s8 %v1303
    %v1305 = vlaneseq
    %v1306 = vshrl.u32 %v1305, 7
    %v1307 = vsub.s32 %v1304, %v1306
    %v1308 = vrot.slane %v1280, %v1307
    %v1309 = vcombine.low %v1287, %v1301
    %v1310 = vcombine.high %v1287, %v1301
    %v1311 = vcombine.low %v1294, %v1308
    %v1312 = vcombine.high %v1294, %v1308
    %v1313 = vcombine.low %v140, %v142
    %v1314 = vcombine.high %v140, %v142
    %v1315 = vcombine.low %v144, %v146
    %v1316 = vcombine.high %v144, %v146
    %v1318 = vunpack.c.l.s4 1983009808
    %v1319 = vunpack.c.0.s8 %v1318
    %v1320 = vlaneseq
    %v1321 = vshrl.u32 %v1320, 7
    %v1322 = vsub.s32 %v1319, %v1321
    %v1323 = vrot.slane %v1313, %v1322
    %v1325 = vunpack.c.l.s4 1983009808
    %v1326 = vunpack.c.0.s8 %v1325
    %v1327 = vlaneseq
    %v1328 = vshrl.u32 %v1327, 7
    %v1329 = vsub.s32 %v1326, %v1328
    %v1330 = vrot.slane %v1314, %v1329
    %v1332 = vunpack.c.l.s4 1983009808
    %v1333 = vunpack.c.0.s8 %v1332
    %v1334 = vlaneseq
    %v1335 = vshrl.u32 %v1334, 7
    %v1336 = vsub.s32 %v1333, %v1335
    %v1337 = vrot.slane %v1315, %v1336
    %v1339 = vunpack.c.l.s4 1983009808
    %v1340 = vunpack.c.0.s8 %v1339
    %v1341 = vlaneseq
    %v1342 = vshrl.u32 %v1341, 7
    %v1343 = vsub.s32 %v1340, %v1342
    %v1344 = vrot.slane %v1316, %v1343
    %v1345 = vcombine.low %v1323, %v1337
    %v1346 = vcombine.high %v1323, %v1337
    %v1347 = vcombine.low %v1330, %v1344
    %v1348 = vcombine.low %v147, %v149
    %v1349 = vcombine.high %v147, %v149
    %v1350 = vcombine.low %v151, %v153
    %v1351 = vcombine.high %v151, %v153
    %v1353 = vunpack.c.l.s4 1983009808
    %v1354 = vunpack.c.0.s8 %v1353
    %v1355 = vlaneseq
    %v1356 = vshrl.u32 %v1355, 7
    %v1357 = vsub.s32 %v1354, %v1356
    %v1358 = vrot.slane %v1348, %v1357
    %v1360 = vunpack.c.l.s4 1983009808
    %v1361 = vunpack.c.0.s8 %v1360
    %v1362 = vlaneseq
    %v1363 = vshrl.u32 %v1362, 7
    %v1364 = vsub.s32 %v1361, %v1363
    %v1365 = vrot.slane %v1349, %v1364
    %v1367 = vunpack.c.l.s4 1983009808
    %v1368 = vunpack.c.0.s8 %v1367
    %v1369 = vlaneseq
    %v1370 = vshrl.u32 %v1369, 7
    %v1371 = vsub.s32 %v1368, %v1370
    %v1372 = vrot.slane %v1350, %v1371
    %v1374 = vunpack.c.l.s4 1983009808
    %v1375 = vunpack.c.0.s8 %v1374
    %v1376 = vlaneseq
    %v1377 = vshrl.u32 %v1376, 7
    %v1378 = vsub.s32 %v1375, %v1377
    %v1379 = vrot.slane %v1351, %v1378
    %v1380 = vcombine.low %v1358, %v1372
    %v1381 = vcombine.high %v1358, %v1372
    %v1382 = vcombine.low %v1365, %v1379
    %v1383 = vcombine.high %v1365, %v1379
    %v1384 = vcombine.low %v148, %v150
    %v1385 = vcombine.high %v148, %v150
    %v1386 = vcombine.low %v152, %v154
    %v1387 = vcombine.high %v152, %v154
    %v1389 = vunpack.c.l.s4 1983009808
    %v1390 = vunpack.c.0.s8 %v1389
    %v1391 = vlaneseq
    %v1392 = vshrl.u32 %v1391, 7
    %v1393 = vsub.s32 %v1390, %v1392
    %v1394 = vrot.slane %v1384, %v1393
    %v1396 = vunpack.c.l.s4 1983009808
    %v1397 = vunpack.c.0.s8 %v1396
    %v1398 = vlaneseq
    %v1399 = vshrl.u32 %v1398, 7
    %v1400 = vsub.s32 %v1397, %v1399
    %v1401 = vrot.slane %v1385, %v1400
    %v1403 = vunpack.c.l.s4 1983009808
    %v1404 = vunpack.c.0.s8 %v1403
    %v1405 = vlaneseq
    %v1406 = vshrl.u32 %v1405, 7
    %v1407 = vsub.s32 %v1404, %v1406
    %v1408 = vrot.slane %v1386, %v1407
    %v1410 = vunpack.c.l.s4 1983009808
    %v1411 = vunpack.c.0.s8 %v1410
    %v1412 = vlaneseq
    %v1413 = vshrl.u32 %v1412, 7
    %v1414 = vsub.s32 %v1411, %v1413
    %v1415 = vrot.slane %v1387, %v1414
    %v1416 = vcombine.low %v1394, %v1408
    %v1417 = vcombine.high %v1394, %v1408
    %v1418 = vcombine.low %v1401, %v1415
    %v1531 = vpack.c.bf16 %v386, %v315
    %v1532 = vpack.c.bf16 %v387, %v316
    %v1533 = vpack.c.bf16 %v388, %v317
    %v1534 = vpack.c.bf16 %v389, %v318
    %v1535 = vpack.c.bf16 %v422, %v351
    %v1536 = vpack.c.bf16 %v423, %v352
    %v1537 = vpack.c.bf16 %v424, %v353
    %v1538 = vpack.c.bf16 %v528, %v457
    %v1539 = vpack.c.bf16 %v529, %v458
    %v1540 = vpack.c.bf16 %v530, %v459
    %v1541 = vpack.c.bf16 %v531, %v460
    %v1542 = vpack.c.bf16 %v564, %v493
    %v1543 = vpack.c.bf16 %v565, %v494
    %v1544 = vpack.c.bf16 %v566, %v495
    %v1545 = vpack.c.bf16 %v670, %v599
    %v1546 = vpack.c.bf16 %v671, %v600
    %v1547 = vpack.c.bf16 %v672, %v601
    %v1548 = vpack.c.bf16 %v673, %v602
    %v1549 = vpack.c.bf16 %v706, %v635
    %v1550 = vpack.c.bf16 %v707, %v636
    %v1551 = vpack.c.bf16 %v708, %v637
    %v1552 = vpack.c.bf16 %v812, %v741
    %v1553 = vpack.c.bf16 %v813, %v742
    %v1554 = vpack.c.bf16 %v814, %v743
    %v1555 = vpack.c.bf16 %v815, %v744
    %v1556 = vpack.c.bf16 %v848, %v777
    %v1557 = vpack.c.bf16 %v849, %v778
    %v1558 = vpack.c.bf16 %v850, %v779
    %v1559 = vpack.c.bf16 %v954, %v883
    %v1560 = vpack.c.bf16 %v955, %v884
    %v1561 = vpack.c.bf16 %v956, %v885
    %v1562 = vpack.c.bf16 %v957, %v886
    %v1563 = vpack.c.bf16 %v990, %v919
    %v1564 = vpack.c.bf16 %v991, %v920
    %v1565 = vpack.c.bf16 %v992, %v921
    %v1566 = vpack.c.bf16 %v1096, %v1025
    %v1567 = vpack.c.bf16 %v1097, %v1026
    %v1568 = vpack.c.bf16 %v1098, %v1027
    %v1569 = vpack.c.bf16 %v1099, %v1028
    %v1570 = vpack.c.bf16 %v1132, %v1061
    %v1571 = vpack.c.bf16 %v1133, %v1062
    %v1572 = vpack.c.bf16 %v1134, %v1063
    %v1573 = vpack.c.bf16 %v1238, %v1167
    %v1574 = vpack.c.bf16 %v1239, %v1168
    %v1575 = vpack.c.bf16 %v1240, %v1169
    %v1576 = vpack.c.bf16 %v1241, %v1170
    %v1577 = vpack.c.bf16 %v1274, %v1203
    %v1578 = vpack.c.bf16 %v1275, %v1204
    %v1579 = vpack.c.bf16 %v1276, %v1205
    %v1580 = vpack.c.bf16 %v1380, %v1309
    %v1581 = vpack.c.bf16 %v1381, %v1310
    %v1582 = vpack.c.bf16 %v1382, %v1311
    %v1583 = vpack.c.bf16 %v1383, %v1312
    %v1584 = vpack.c.bf16 %v1416, %v1345
    %v1585 = vpack.c.bf16 %v1417, %v1346
    %v1586 = vpack.c.bf16 %v1418, %v1347
    %v1587 = vld [vmem:[%s1] sm:$0xff]
    %v1588 = vld [vmem:[%s1 + $0x8] sm:$0xff]
    %v1589 = vld [vmem:[%s1 + $0x10] sm:$0xff]
    %v1590 = vld [vmem:[%s1 + $0x18] sm:$0xff]
    %v1591 = vld [vmem:[%s1 + $0x20] sm:$0xff]
    %v1592 = vld [vmem:[%s1 + $0x28] sm:$0xff]
    %v1593 = vld [vmem:[%s1 + $0x30] sm:$0xff]
    %v1594 = vld [vmem:[%s1 + $0x38] sm:$0xff]
    %v1595 = vld [vmem:[%s1 + $0x40] sm:$0xff]
    %v1596 = vld [vmem:[%s1 + $0x48] sm:$0xff]
    %v1597 = vld [vmem:[%s1 + $0x50] sm:$0xff]
    %v1598 = vld [vmem:[%s1 + $0x58] sm:$0xff]
    %v1599 = vld [vmem:[%s1 + $0x60] sm:$0xff]
    %v1600 = vld [vmem:[%s1 + $0x68] sm:$0xff]
    %v1601 = vld [vmem:[%s1 + $0x70] sm:$0xff]
    %v1602 = vld [vmem:[%s1 + $0x78] sm:$0xff]
    %v1603 = vld [vmem:[%s1 + $0x80] sm:$0xff]
    %v1604 = vld [vmem:[%s1 + $0x88] sm:$0xff]
    %v1605 = vld [vmem:[%s1 + $0x90] sm:$0xff]
    %v1606 = vld [vmem:[%s1 + $0x98] sm:$0xff]
    %v1607 = vld [vmem:[%s1 + $0xa0] sm:$0xff]
    %v1608 = vld [vmem:[%s1 + $0xa8] sm:$0xff]
    %v1609 = vld [vmem:[%s1 + $0xb0] sm:$0xff]
    %v1610 = vld [vmem:[%s1 + $0xb8] sm:$0xff]
    %v1611 = vld [vmem:[%s1 + $0xc0] sm:$0xff]
    %v1612 = vld [vmem:[%s1 + $0xc8] sm:$0xff]
    %v1613 = vld [vmem:[%s1 + $0xd0] sm:$0xff]
    %v1614 = vld [vmem:[%s1 + $0xd8] sm:$0xff]
    %v1615 = vld [vmem:[%s1 + $0xe0] sm:$0xff]
    %v1616 = vld [vmem:[%s1 + $0xe8] sm:$0xff]
    %v1617 = vld [vmem:[%s1 + $0xf0] sm:$0xff]
    %v1618 = vld [vmem:[%s1 + $0xf8] sm:$0xff]
    %v1619 = vld [vmem:[%s1 + $0x100] sm:$0xff]
    %v1620 = vld [vmem:[%s1 + $0x108] sm:$0xff]
    %v1621 = vld [vmem:[%s1 + $0x110] sm:$0xff]
    %v1622 = vld [vmem:[%s1 + $0x118] sm:$0xff]
    %v1623 = vld [vmem:[%s1 + $0x120] sm:$0xff]
    %v1624 = vld [vmem:[%s1 + $0x128] sm:$0xff]
    %v1625 = vld [vmem:[%s1 + $0x130] sm:$0xff]
    %v1626 = vld [vmem:[%s1 + $0x138] sm:$0xff]
    %v1627 = vld [vmem:[%s1 + $0x140] sm:$0xff]
    %v1628 = vld [vmem:[%s1 + $0x148] sm:$0xff]
    %v1629 = vld [vmem:[%s1 + $0x150] sm:$0xff]
    %v1630 = vld [vmem:[%s1 + $0x158] sm:$0xff]
    %v1631 = vld [vmem:[%s1 + $0x160] sm:$0xff]
    %v1632 = vld [vmem:[%s1 + $0x168] sm:$0xff]
    %v1633 = vld [vmem:[%s1 + $0x170] sm:$0xff]
    %v1634 = vld [vmem:[%s1 + $0x178] sm:$0xff]
    %v1635 = vld [vmem:[%s1 + $0x180] sm:$0xff]
    %v1636 = vld [vmem:[%s1 + $0x188] sm:$0xff]
    %v1637 = vld [vmem:[%s1 + $0x190] sm:$0xff]
    %v1638 = vld [vmem:[%s1 + $0x198] sm:$0xff]
    %v1639 = vld [vmem:[%s1 + $0x1a0] sm:$0xff]
    %v1640 = vld [vmem:[%s1 + $0x1a8] sm:$0xff]
    %v1641 = vld [vmem:[%s1 + $0x1b0] sm:$0xff]
    %v1642 = vld [vmem:[%s1 + $0x1b8] sm:$0xff]
    %v1643 = vld [vmem:[%s1 + $0x1c0] sm:$0xff]
    %v1644 = vld [vmem:[%s1 + $0x1c8] sm:$0xff]
    %v1645 = vld [vmem:[%s1 + $0x1d0] sm:$0xff]
    %v1646 = vld [vmem:[%s1 + $0x1d8] sm:$0xff]
    %v1647 = vld [vmem:[%s1 + $0x1e0] sm:$0xff]
    %v1648 = vld [vmem:[%s1 + $0x1e8] sm:$0xff]
    %v1649 = vld [vmem:[%s1 + $0x1f0] sm:$0xff]
    %v1650 = vld [vmem:[%s1 + $0x1f8] sm:$0xff]
    %v1651 = vld [vmem:[%s1 + $0x200] sm:$0xff]
    %v1652 = vld [vmem:[%s1 + $0x208] sm:$0xff]
    %v1653 = vld [vmem:[%s1 + $0x210] sm:$0xff]
    %v1654 = vld [vmem:[%s1 + $0x218] sm:$0xff]
    %v1655 = vld [vmem:[%s1 + $0x220] sm:$0xff]
    %v1656 = vld [vmem:[%s1 + $0x228] sm:$0xff]
    %v1657 = vld [vmem:[%s1 + $0x230] sm:$0xff]
    %v1658 = vld [vmem:[%s1 + $0x238] sm:$0xff]
    %v1659 = vld [vmem:[%s1 + $0x240] sm:$0xff]
    %v1660 = vld [vmem:[%s1 + $0x248] sm:$0xff]
    %v1661 = vld [vmem:[%s1 + $0x250] sm:$0xff]
    %v1662 = vld [vmem:[%s1 + $0x258] sm:$0xff]
    %v1663 = vld [vmem:[%s1 + $0x260] sm:$0xff]
    %v1664 = vld [vmem:[%s1 + $0x268] sm:$0xff]
    %v1665 = vld [vmem:[%s1 + $0x270] sm:$0xff]
    %v1666 = vld [vmem:[%s1 + $0x278] sm:$0xff]
    %v1667 = vld [vmem:[%s1 + $0x280] sm:$0xff]
    %v1668 = vld [vmem:[%s1 + $0x288] sm:$0xff]
    %v1669 = vld [vmem:[%s1 + $0x290] sm:$0xff]
    %v1670 = vld [vmem:[%s1 + $0x298] sm:$0xff]
    %v1671 = vld [vmem:[%s1 + $0x2a0] sm:$0xff]
    %v1672 = vld [vmem:[%s1 + $0x2a8] sm:$0xff]
    %v1673 = vld [vmem:[%s1 + $0x2b0] sm:$0xff]
    %v1674 = vld [vmem:[%s1 + $0x2b8] sm:$0xff]
    %v1675 = vld [vmem:[%s1 + $0x2c0] sm:$0xff]
    %v1676 = vld [vmem:[%s1 + $0x2c8] sm:$0xff]
    %v1677 = vld [vmem:[%s1 + $0x2d0] sm:$0xff]
    %v1678 = vld [vmem:[%s1 + $0x2d8] sm:$0xff]
    %v1679 = vld [vmem:[%s1 + $0x2e0] sm:$0xff]
    %v1680 = vld [vmem:[%s1 + $0x2e8] sm:$0xff]
    %v1681 = vld [vmem:[%s1 + $0x2f0] sm:$0xff]
    %v1682 = vld [vmem:[%s1 + $0x2f8] sm:$0xff]
    %v1683 = vld [vmem:[%s1 + $0x300] sm:$0xff]
    %v1684 = vld [vmem:[%s1 + $0x308] sm:$0xff]
    %v1685 = vld [vmem:[%s2] sm:$0x3]
    %v1687 = vlaneseq
    %v1688 = vshrl.u32 %v1687, 7
    %v1689 = vsub.s32 0, %v1688
    %v1690 = vrot.slane %v1685, %v1689
    %v1691 = vlaneseq
    %v1692 = vshrl.u32 %v1691, 7
    %v1693 = vsub.s32 1, %v1692
    %v1694 = vrot.slane %v1685, %v1693
    %v1795 = vunpack.c.l.b16 %v1587
    %v1796 = vunpack.c.h.b16 %v1587
    %v1797 = vunpack.c.l.b16 %v1588
    %v1798 = vunpack.c.h.b16 %v1588
    %v1799 = vunpack.c.l.b16 %v1589
    %v1800 = vunpack.c.h.b16 %v1589
    %v1801 = vunpack.c.l.b16 %v1590
    %v1802 = vunpack.c.h.b16 %v1590
    %v1803 = vunpack.c.l.b16 %v1591
    %v1804 = vunpack.c.h.b16 %v1591
    %v1805 = vunpack.c.l.b16 %v1592
    %v1806 = vunpack.c.h.b16 %v1592
    %v1807 = vunpack.c.l.b16 %v1593
    %v1808 = vunpack.c.h.b16 %v1593
    %v1809 = vunpack.c.l.b16 %v1594
    %v1810 = vunpack.c.h.b16 %v1594
    %v1811 = vunpack.c.l.b16 %v1595
    %v1812 = vunpack.c.h.b16 %v1595
    %v1813 = vunpack.c.l.b16 %v1596
    %v1814 = vunpack.c.h.b16 %v1596
    %v1815 = vunpack.c.l.b16 %v1597
    %v1816 = vunpack.c.h.b16 %v1597
    %v1817 = vunpack.c.l.b16 %v1598
    %v1818 = vunpack.c.h.b16 %v1598
    %v1819 = vunpack.c.l.b16 %v1599
    %v1820 = vunpack.c.h.b16 %v1599
    %v1821 = vunpack.c.l.b16 %v1600
    %v1822 = vunpack.c.h.b16 %v1600
    %v1823 = vunpack.c.l.b16 %v1601
    %v1824 = vunpack.c.h.b16 %v1601
    %v1825 = vunpack.c.l.b16 %v1602
    %v1826 = vunpack.c.h.b16 %v1602
    %v1827 = vunpack.c.l.b16 %v1603
    %v1828 = vunpack.c.h.b16 %v1603
    %v1829 = vunpack.c.l.b16 %v1604
    %v1830 = vunpack.c.h.b16 %v1604
    %v1831 = vunpack.c.l.b16 %v1605
    %v1832 = vunpack.c.h.b16 %v1605
    %v1833 = vunpack.c.l.b16 %v1606
    %v1834 = vunpack.c.h.b16 %v1606
    %v1835 = vunpack.c.l.b16 %v1607
    %v1836 = vunpack.c.h.b16 %v1607
    %v1837 = vunpack.c.l.b16 %v1608
    %v1838 = vunpack.c.h.b16 %v1608
    %v1839 = vunpack.c.l.b16 %v1609
    %v1840 = vunpack.c.h.b16 %v1609
    %v1841 = vunpack.c.l.b16 %v1610
    %v1842 = vunpack.c.h.b16 %v1610
    %v1843 = vunpack.c.l.b16 %v1611
    %v1844 = vunpack.c.h.b16 %v1611
    %v1845 = vunpack.c.l.b16 %v1612
    %v1846 = vunpack.c.h.b16 %v1612
    %v1847 = vunpack.c.l.b16 %v1613
    %v1848 = vunpack.c.h.b16 %v1613
    %v1849 = vunpack.c.l.b16 %v1614
    %v1850 = vunpack.c.h.b16 %v1614
    %v1851 = vunpack.c.l.b16 %v1615
    %v1852 = vunpack.c.h.b16 %v1615
    %v1853 = vunpack.c.l.b16 %v1616
    %v1854 = vunpack.c.h.b16 %v1616
    %v1855 = vunpack.c.l.b16 %v1617
    %v1856 = vunpack.c.h.b16 %v1617
    %v1857 = vunpack.c.l.b16 %v1618
    %v1858 = vunpack.c.h.b16 %v1618
    %v1859 = vunpack.c.l.b16 %v1619
    %v1860 = vunpack.c.h.b16 %v1619
    %v1861 = vunpack.c.l.b16 %v1620
    %v1862 = vunpack.c.h.b16 %v1620
    %v1863 = vunpack.c.l.b16 %v1621
    %v1864 = vunpack.c.h.b16 %v1621
    %v1865 = vunpack.c.l.b16 %v1622
    %v1866 = vunpack.c.h.b16 %v1622
    %v1867 = vunpack.c.l.b16 %v1623
    %v1868 = vunpack.c.h.b16 %v1623
    %v1869 = vunpack.c.l.b16 %v1624
    %v1870 = vunpack.c.h.b16 %v1624
    %v1871 = vunpack.c.l.b16 %v1625
    %v1872 = vunpack.c.h.b16 %v1625
    %v1873 = vunpack.c.l.b16 %v1626
    %v1874 = vunpack.c.h.b16 %v1626
    %v1875 = vunpack.c.l.b16 %v1627
    %v1876 = vunpack.c.h.b16 %v1627
    %v1877 = vunpack.c.l.b16 %v1628
    %v1878 = vunpack.c.h.b16 %v1628
    %v1879 = vunpack.c.l.b16 %v1629
    %v1880 = vunpack.c.h.b16 %v1629
    %v1881 = vunpack.c.l.b16 %v1630
    %v1882 = vunpack.c.h.b16 %v1630
    %v1883 = vunpack.c.l.b16 %v1631
    %v1884 = vunpack.c.h.b16 %v1631
    %v1885 = vunpack.c.l.b16 %v1632
    %v1886 = vunpack.c.h.b16 %v1632
    %v1887 = vunpack.c.l.b16 %v1633
    %v1888 = vunpack.c.h.b16 %v1633
    %v1889 = vunpack.c.l.b16 %v1634
    %v1890 = vunpack.c.h.b16 %v1634
    %v1891 = vunpack.c.l.b16 %v1635
    %v1892 = vunpack.c.h.b16 %v1635
    %v1893 = vunpack.c.l.b16 %v1636
    %v1894 = vunpack.c.h.b16 %v1636
    %v1895 = vunpack.c.l.b16 %v1637
    %v1896 = vunpack.c.h.b16 %v1637
    %v1897 = vunpack.c.l.b16 %v1638
    %v1898 = vunpack.c.h.b16 %v1638
    %v1899 = vunpack.c.l.b16 %v1639
    %v1900 = vunpack.c.h.b16 %v1639
    %v1901 = vunpack.c.l.b16 %v1640
    %v1902 = vunpack.c.h.b16 %v1640
    %v1903 = vunpack.c.l.b16 %v1641
    %v1904 = vunpack.c.h.b16 %v1641
    %v1905 = vunpack.c.l.b16 %v1642
    %v1906 = vunpack.c.h.b16 %v1642
    %v1907 = vunpack.c.l.b16 %v1643
    %v1908 = vunpack.c.h.b16 %v1643
    %v1909 = vunpack.c.l.b16 %v1644
    %v1910 = vunpack.c.h.b16 %v1644
    %v1911 = vunpack.c.l.b16 %v1645
    %v1912 = vunpack.c.h.b16 %v1645
    %v1913 = vunpack.c.l.b16 %v1646
    %v1914 = vunpack.c.h.b16 %v1646
    %v1915 = vunpack.c.l.b16 %v1647
    %v1916 = vunpack.c.h.b16 %v1647
    %v1917 = vunpack.c.l.b16 %v1648
    %v1918 = vunpack.c.h.b16 %v1648
    %v1919 = vunpack.c.l.b16 %v1649
    %v1920 = vunpack.c.h.b16 %v1649
    %v1921 = vunpack.c.l.b16 %v1650
    %v1922 = vunpack.c.h.b16 %v1650
    %v1923 = vunpack.c.l.b16 %v1651
    %v1924 = vunpack.c.h.b16 %v1651
    %v1925 = vunpack.c.l.b16 %v1652
    %v1926 = vunpack.c.h.b16 %v1652
    %v1927 = vunpack.c.l.b16 %v1653
    %v1928 = vunpack.c.h.b16 %v1653
    %v1929 = vunpack.c.l.b16 %v1654
    %v1930 = vunpack.c.h.b16 %v1654
    %v1931 = vunpack.c.l.b16 %v1655
    %v1932 = vunpack.c.h.b16 %v1655
    %v1933 = vunpack.c.l.b16 %v1656
    %v1934 = vunpack.c.h.b16 %v1656
    %v1935 = vunpack.c.l.b16 %v1657
    %v1936 = vunpack.c.h.b16 %v1657
    %v1937 = vunpack.c.l.b16 %v1658
    %v1938 = vunpack.c.h.b16 %v1658
    %v1939 = vunpack.c.l.b16 %v1659
    %v1940 = vunpack.c.h.b16 %v1659
    %v1941 = vunpack.c.l.b16 %v1660
    %v1942 = vunpack.c.h.b16 %v1660
    %v1943 = vunpack.c.l.b16 %v1661
    %v1944 = vunpack.c.h.b16 %v1661
    %v1945 = vunpack.c.l.b16 %v1662
    %v1946 = vunpack.c.h.b16 %v1662
    %v1947 = vunpack.c.l.b16 %v1663
    %v1948 = vunpack.c.h.b16 %v1663
    %v1949 = vunpack.c.l.b16 %v1664
    %v1950 = vunpack.c.h.b16 %v1664
    %v1951 = vunpack.c.l.b16 %v1665
    %v1952 = vunpack.c.h.b16 %v1665
    %v1953 = vunpack.c.l.b16 %v1666
    %v1954 = vunpack.c.h.b16 %v1666
    %v1955 = vunpack.c.l.b16 %v1667
    %v1956 = vunpack.c.h.b16 %v1667
    %v1957 = vunpack.c.l.b16 %v1668
    %v1958 = vunpack.c.h.b16 %v1668
    %v1959 = vunpack.c.l.b16 %v1669
    %v1960 = vunpack.c.h.b16 %v1669
    %v1961 = vunpack.c.l.b16 %v1670
    %v1962 = vunpack.c.h.b16 %v1670
    %v1963 = vunpack.c.l.b16 %v1671
    %v1964 = vunpack.c.h.b16 %v1671
    %v1965 = vunpack.c.l.b16 %v1672
    %v1966 = vunpack.c.h.b16 %v1672
    %v1967 = vunpack.c.l.b16 %v1673
    %v1968 = vunpack.c.h.b16 %v1673
    %v1969 = vunpack.c.l.b16 %v1674
    %v1970 = vunpack.c.h.b16 %v1674
    %v1971 = vunpack.c.l.b16 %v1675
    %v1972 = vunpack.c.h.b16 %v1675
    %v1973 = vunpack.c.l.b16 %v1676
    %v1974 = vunpack.c.h.b16 %v1676
    %v1975 = vunpack.c.l.b16 %v1677
    %v1976 = vunpack.c.h.b16 %v1677
    %v1977 = vunpack.c.l.b16 %v1678
    %v1978 = vunpack.c.h.b16 %v1678
    %v1979 = vunpack.c.l.b16 %v1679
    %v1980 = vunpack.c.h.b16 %v1679
    %v1981 = vunpack.c.l.b16 %v1680
    %v1982 = vunpack.c.h.b16 %v1680
    %v1983 = vunpack.c.l.b16 %v1681
    %v1984 = vunpack.c.h.b16 %v1681
    %v1985 = vunpack.c.l.b16 %v1682
    %v1986 = vunpack.c.h.b16 %v1682
    %v1987 = vunpack.c.l.b16 %v1683
    %v1988 = vunpack.c.h.b16 %v1683
    %v1989 = vunpack.c.l.b16 %v1684
    %v1990 = vunpack.c.h.b16 %v1684
    %v1991 = vpack.c.b16 %v1797, %v1795
    %v1992 = vpack.c.b16 %v1798, %v1796
    %v1993 = vpack.c.b16 %v1801, %v1799
    %v1994 = vpack.c.b16 %v1802, %v1800
    %v1995 = vpack.c.b16 %v1805, %v1803
    %v1996 = vpack.c.b16 %v1806, %v1804
    %v1997 = vpack.c.b16 %v1809, %v1807
    %v1998 = vpack.c.b16 %v1810, %v1808
    %v1999 = vpack.c.b16 %v1813, %v1811
    %v2000 = vpack.c.b16 %v1814, %v1812
    %v2001 = vpack.c.b16 %v1817, %v1815
    %v2002 = vpack.c.b16 %v1818, %v1816
    %v2003 = vpack.c.b16 %v1821, %v1819
    %v2004 = vpack.c.b16 %v1822, %v1820
    %v2005 = vpack.c.b16 %v1825, %v1823
    %v2006 = vpack.c.b16 %v1826, %v1824
    %v2007 = vpack.c.b16 %v1829, %v1827
    %v2008 = vpack.c.b16 %v1830, %v1828
    %v2009 = vpack.c.b16 %v1833, %v1831
    %v2010 = vpack.c.b16 %v1834, %v1832
    %v2011 = vpack.c.b16 %v1837, %v1835
    %v2012 = vpack.c.b16 %v1838, %v1836
    %v2013 = vpack.c.b16 %v1841, %v1839
    %v2014 = vpack.c.b16 %v1842, %v1840
    %v2015 = vpack.c.b16 %v1845, %v1843
    %v2016 = vpack.c.b16 %v1846, %v1844
    %v2017 = vpack.c.b16 %v1849, %v1847
    %v2018 = vpack.c.b16 %v1850, %v1848
    %v2019 = vpack.c.b16 %v1853, %v1851
    %v2020 = vpack.c.b16 %v1854, %v1852
    %v2021 = vpack.c.b16 %v1857, %v1855
    %v2022 = vpack.c.b16 %v1858, %v1856
    %v2023 = vpack.c.b16 %v1861, %v1859
    %v2024 = vpack.c.b16 %v1862, %v1860
    %v2025 = vpack.c.b16 %v1865, %v1863
    %v2026 = vpack.c.b16 %v1866, %v1864
    %v2027 = vpack.c.b16 %v1869, %v1867
    %v2028 = vpack.c.b16 %v1870, %v1868
    %v2029 = vpack.c.b16 %v1873, %v1871
    %v2030 = vpack.c.b16 %v1874, %v1872
    %v2031 = vpack.c.b16 %v1877, %v1875
    %v2032 = vpack.c.b16 %v1878, %v1876
    %v2033 = vpack.c.b16 %v1881, %v1879
    %v2034 = vpack.c.b16 %v1882, %v1880
    %v2035 = vpack.c.b16 %v1885, %v1883
    %v2036 = vpack.c.b16 %v1886, %v1884
    %v2037 = vpack.c.b16 %v1889, %v1887
    %v2038 = vpack.c.b16 %v1890, %v1888
    %v2039 = vpack.c.b16 %v1893, %v1891
    %v2040 = vpack.c.b16 %v1894, %v1892
    %v2041 = vpack.c.b16 %v1897, %v1895
    %v2042 = vpack.c.b16 %v1898, %v1896
    %v2043 = vpack.c.b16 %v1901, %v1899
    %v2044 = vpack.c.b16 %v1902, %v1900
    %v2045 = vpack.c.b16 %v1905, %v1903
    %v2046 = vpack.c.b16 %v1906, %v1904
    %v2047 = vpack.c.b16 %v1909, %v1907
    %v2048 = vpack.c.b16 %v1910, %v1908
    %v2049 = vpack.c.b16 %v1913, %v1911
    %v2050 = vpack.c.b16 %v1914, %v1912
    %v2051 = vpack.c.b16 %v1917, %v1915
    %v2052 = vpack.c.b16 %v1918, %v1916
    %v2053 = vpack.c.b16 %v1921, %v1919
    %v2054 = vpack.c.b16 %v1922, %v1920
    %v2055 = vpack.c.b16 %v1925, %v1923
    %v2056 = vpack.c.b16 %v1926, %v1924
    %v2057 = vpack.c.b16 %v1929, %v1927
    %v2058 = vpack.c.b16 %v1930, %v1928
    %v2059 = vpack.c.b16 %v1933, %v1931
    %v2060 = vpack.c.b16 %v1934, %v1932
    %v2061 = vpack.c.b16 %v1937, %v1935
    %v2062 = vpack.c.b16 %v1938, %v1936
    %v2063 = vpack.c.b16 %v1941, %v1939
    %v2064 = vpack.c.b16 %v1942, %v1940
    %v2065 = vpack.c.b16 %v1945, %v1943
    %v2066 = vpack.c.b16 %v1946, %v1944
    %v2067 = vpack.c.b16 %v1949, %v1947
    %v2068 = vpack.c.b16 %v1950, %v1948
    %v2069 = vpack.c.b16 %v1953, %v1951
    %v2070 = vpack.c.b16 %v1954, %v1952
    %v2071 = vpack.c.b16 %v1957, %v1955
    %v2072 = vpack.c.b16 %v1958, %v1956
    %v2073 = vpack.c.b16 %v1961, %v1959
    %v2074 = vpack.c.b16 %v1962, %v1960
    %v2075 = vpack.c.b16 %v1965, %v1963
    %v2076 = vpack.c.b16 %v1966, %v1964
    %v2077 = vpack.c.b16 %v1969, %v1967
    %v2078 = vpack.c.b16 %v1970, %v1968
    %v2079 = vpack.c.b16 %v1973, %v1971
    %v2080 = vpack.c.b16 %v1974, %v1972
    %v2081 = vpack.c.b16 %v1977, %v1975
    %v2082 = vpack.c.b16 %v1978, %v1976
    %v2083 = vpack.c.b16 %v1981, %v1979
    %v2084 = vpack.c.b16 %v1982, %v1980
    %v2085 = vpack.c.b16 %v1985, %v1983
    %v2086 = vpack.c.b16 %v1986, %v1984
    %v2087 = vpack.c.b16 %v1989, %v1987
    %v2088 = vpack.c.b16 %v1990, %v1988
    %vm2187 = vcmask 130048
    %v2189 = vsel %vm2187, %v1537, 0
    %v2192 = vsel %vm2187, %v1544, 0
    %v2195 = vsel %vm2187, %v1551, 0
    %v2198 = vsel %vm2187, %v1558, 0
    %v2201 = vsel %vm2187, %v1565, 0
    %v2204 = vsel %vm2187, %v1572, 0
    %v2207 = vsel %vm2187, %v1579, 0
    %v2210 = vsel %vm2187, %v1586, 0
    %2212 = vmatprep.subr.bf16.mxu0 %v1992
    %2213 = vmatpush1.bf16.msra.mxu0 %v1991
    %2214 = vmatprep.subr.bf16.mxu0 %v1994
    %2215 = vmatpush1.bf16.msra.mxu0 %v1993
    %2216 = vmatprep.subr.bf16.mxu0 %v1996
    %2217 = vmatpush1.bf16.msra.mxu0 %v1995
    %2218 = vmatprep.subr.bf16.mxu0 %v1998
    %2219 = vmatpush1.bf16.msra.mxu0 %v1997
    %2220 = vmatprep.subr.bf16.mxu0 %v2000
    %2221 = vmatpush1.bf16.msra.mxu0 %v1999
    %2222 = vmatprep.subr.bf16.mxu0 %v2002
    %2223 = vmatpush1.bf16.msra.mxu0 %v2001
    %2224 = vmatprep.subr.bf16.mxu0 %v2004
    %2225 = vmatpush1.bf16.msra.mxu0 %v2003
    %2226 = vmatprep.subr.bf16.mxu0 %v2006
    %2227 = vmatpush1.bf16.msra.mxu0 %v2005
    %2228 = vmatprep.subr.bf16.mxu0 %v2008
    %2229 = vmatpush1.bf16.msra.mxu0 %v2007
    %2230 = vmatprep.subr.bf16.mxu0 %v2010
    %2231 = vmatpush1.bf16.msra.mxu0 %v2009
    %2232 = vmatprep.subr.bf16.mxu0 %v2012
    %2233 = vmatpush1.bf16.msra.mxu0 %v2011
    %2234 = vmatprep.subr.bf16.mxu0 %v2014
    %2235 = vmatpush1.bf16.msra.mxu0 %v2013
    %2236 = vmatprep.subr.bf16.mxu0 %v2016
    %2237 = vmatpush1.bf16.msra.mxu0 %v2015
    %2238 = vmatprep.subr.bf16.mxu0 %v2018
    %2239 = vmatpush1.bf16.msra.mxu0 %v2017
    %2240 = vmatprep.subr.bf16.mxu0 %v2020
    %2241 = vmatpush1.bf16.msra.mxu0 %v2019
    %2242 = vmatprep.subr.bf16.mxu0 %v2022
    %2243 = vmatpush1.bf16.msra.mxu0 %v2021
    %2244 = vmatprep.mubr.bf16.mxu0 %v1532
    %2245 = vmatmul.mubr.bf16.gmra.mrb[0].mxu0 %v1531
    %v2246 = vpop.f32.mrb[0].mxu0
    %v2247 = vadd.f32 %v1690, %v2246
    %v2248 = vpop.f32.mrb[0].mxu0
    %v2249 = vadd.f32 %v1694, %v2248
    %v2250 = vpop.f32.mrb[0].mxu0
    %v2251 = vadd.f32 %v1690, %v2250
    %v2252 = vpop.f32.mrb[0].mxu0
    %v2253 = vadd.f32 %v1694, %v2252
    %2254 = vmatprep.mubr.bf16.mxu0 %v1539
    %2255 = vmatmul.mubr.bf16.gmra.mrb[0].mxu0 %v1538
    %v2256 = vpop.f32.mrb[0].mxu0
    %v2257 = vadd.f32 %v1690, %v2256
    %v2258 = vpop.f32.mrb[0].mxu0
    %v2259 = vadd.f32 %v1694, %v2258
    %v2260 = vpop.f32.mrb[0].mxu0
    %v2261 = vadd.f32 %v1690, %v2260
    %v2262 = vpop.f32.mrb[0].mxu0
    %v2263 = vadd.f32 %v1694, %v2262
    %2264 = vmatprep.mubr.bf16.mxu0 %v1546
    %2265 = vmatmul.mubr.bf16.gmra.mrb[0].mxu0 %v1545
    %v2266 = vpop.f32.mrb[0].mxu0
    %v2267 = vadd.f32 %v1690, %v2266
    %v2268 = vpop.f32.mrb[0].mxu0
    %v2269 = vadd.f32 %v1694, %v2268
    %v2270 = vpop.f32.mrb[0].mxu0
    %v2271 = vadd.f32 %v1690, %v2270
    %v2272 = vpop.f32.mrb[0].mxu0
    %v2273 = vadd.f32 %v1694, %v2272
    %2274 = vmatprep.mubr.bf16.mxu0 %v1553
    %2275 = vmatmul.mubr.bf16.gmra.mrb[0].mxu0 %v1552
    %v2276 = vpop.f32.mrb[0].mxu0
    %v2277 = vadd.f32 %v1690, %v2276
    %v2278 = vpop.f32.mrb[0].mxu0
    %v2279 = vadd.f32 %v1694, %v2278
    %v2280 = vpop.f32.mrb[0].mxu0
    %v2281 = vadd.f32 %v1690, %v2280
    %v2282 = vpop.f32.mrb[0].mxu0
    %v2283 = vadd.f32 %v1694, %v2282
    %2284 = vmatprep.mubr.bf16.mxu0 %v1560
    %2285 = vmatmul.mubr.bf16.gmra.mrb[0].mxu0 %v1559
    %v2286 = vpop.f32.mrb[0].mxu0
    %v2287 = vadd.f32 %v1690, %v2286
    %v2288 = vpop.f32.mrb[0].mxu0
    %v2289 = vadd.f32 %v1694, %v2288
    %v2290 = vpop.f32.mrb[0].mxu0
    %v2291 = vadd.f32 %v1690, %v2290
    %v2292 = vpop.f32.mrb[0].mxu0
    %v2293 = vadd.f32 %v1694, %v2292
    %2294 = vmatprep.mubr.bf16.mxu0 %v1567
    %2295 = vmatmul.mubr.bf16.gmra.mrb[0].mxu0 %v1566
    %v2296 = vpop.f32.mrb[0].mxu0
    %v2297 = vadd.f32 %v1690, %v2296
    %v2298 = vpop.f32.mrb[0].mxu0
    %v2299 = vadd.f32 %v1694, %v2298
    %v2300 = vpop.f32.mrb[0].mxu0
    %v2301 = vadd.f32 %v1690, %v2300
    %v2302 = vpop.f32.mrb[0].mxu0
    %v2303 = vadd.f32 %v1694, %v2302
    %2304 = vmatprep.mubr.bf16.mxu0 %v1574
    %2305 = vmatmul.mubr.bf16.gmra.mrb[0].mxu0 %v1573
    %v2306 = vpop.f32.mrb[0].mxu0
    %v2307 = vadd.f32 %v1690, %v2306
    %v2308 = vpop.f32.mrb[0].mxu0
    %v2309 = vadd.f32 %v1694, %v2308
    %v2310 = vpop.f32.mrb[0].mxu0
    %v2311 = vadd.f32 %v1690, %v2310
    %v2312 = vpop.f32.mrb[0].mxu0
    %v2313 = vadd.f32 %v1694, %v2312
    %2314 = vmatprep.mubr.bf16.mxu0 %v1581
    %2315 = vmatmul.mubr.bf16.gmra.mrb[0].mxu0 %v1580
    %v2316 = vpop.f32.mrb[0].mxu0
    %v2317 = vadd.f32 %v1690, %v2316
    %v2318 = vpop.f32.mrb[0].mxu0
    %v2319 = vadd.f32 %v1694, %v2318
    %v2320 = vpop.f32.mrb[0].mxu0
    %v2321 = vadd.f32 %v1690, %v2320
    %v2322 = vpop.f32.mrb[0].mxu0
    %v2323 = vadd.f32 %v1694, %v2322
    %2324 = vdwg.mxu0
    %2325 = vmatprep.subr.bf16.mxu0 %v2024
    %2326 = vmatpush1.bf16.msra.mxu0 %v2023
    %2327 = vmatprep.subr.bf16.mxu0 %v2026
    %2328 = vmatpush1.bf16.msra.mxu0 %v2025
    %2329 = vmatprep.subr.bf16.mxu0 %v2028
    %2330 = vmatpush1.bf16.msra.mxu0 %v2027
    %2331 = vmatprep.subr.bf16.mxu0 %v2030
    %2332 = vmatpush1.bf16.msra.mxu0 %v2029
    %2333 = vmatprep.subr.bf16.mxu0 %v2032
    %2334 = vmatpush1.bf16.msra.mxu0 %v2031
    %2335 = vmatprep.subr.bf16.mxu0 %v2034
    %2336 = vmatpush1.bf16.msra.mxu0 %v2033
    %2337 = vmatprep.subr.bf16.mxu0 %v2036
    %2338 = vmatpush1.bf16.msra.mxu0 %v2035
    %2339 = vmatprep.subr.bf16.mxu0 %v2038
    %2340 = vmatpush1.bf16.msra.mxu0 %v2037
    %2341 = vmatprep.subr.bf16.mxu0 %v2040
    %2342 = vmatpush1.bf16.msra.mxu0 %v2039
    %2343 = vmatprep.subr.bf16.mxu0 %v2042
    %2344 = vmatpush1.bf16.msra.mxu0 %v2041
    %2345 = vmatprep.subr.bf16.mxu0 %v2044
    %2346 = vmatpush1.bf16.msra.mxu0 %v2043
    %2347 = vmatprep.subr.bf16.mxu0 %v2046
    %2348 = vmatpush1.bf16.msra.mxu0 %v2045
    %2349 = vmatprep.subr.bf16.mxu0 %v2048
    %2350 = vmatpush1.bf16.msra.mxu0 %v2047
    %2351 = vmatprep.subr.bf16.mxu0 %v2050
    %2352 = vmatpush1.bf16.msra.mxu0 %v2049
    %2353 = vmatprep.subr.bf16.mxu0 %v2052
    %2354 = vmatpush1.bf16.msra.mxu0 %v2051
    %2355 = vmatprep.subr.bf16.mxu0 %v2054
    %2356 = vmatpush1.bf16.msra.mxu0 %v2053
    %2357 = vmatprep.mubr.bf16.mxu0 %v1534
    %2358 = vmatmul.mubr.bf16.gmra.mrb[0].mxu0 %v1533
    %v2359 = vpop.f32.mrb[0].mxu0
    %v2360 = vadd.f32 %v2247, %v2359
    %v2361 = vpop.f32.mrb[0].mxu0
    %v2362 = vadd.f32 %v2249, %v2361
    %v2363 = vpop.f32.mrb[0].mxu0
    %v2364 = vadd.f32 %v2251, %v2363
    %v2365 = vpop.f32.mrb[0].mxu0
    %v2366 = vadd.f32 %v2253, %v2365
    %2367 = vmatprep.mubr.bf16.mxu0 %v1541
    %2368 = vmatmul.mubr.bf16.gmra.mrb[0].mxu0 %v1540
    %v2369 = vpop.f32.mrb[0].mxu0
    %v2370 = vadd.f32 %v2257, %v2369
    %v2371 = vpop.f32.mrb[0].mxu0
    %v2372 = vadd.f32 %v2259, %v2371
    %v2373 = vpop.f32.mrb[0].mxu0
    %v2374 = vadd.f32 %v2261, %v2373
    %v2375 = vpop.f32.mrb[0].mxu0
    %v2376 = vadd.f32 %v2263, %v2375
    %2377 = vmatprep.mubr.bf16.mxu0 %v1548
    %2378 = vmatmul.mubr.bf16.gmra.mrb[0].mxu0 %v1547
    %v2379 = vpop.f32.mrb[0].mxu0
    %v2380 = vadd.f32 %v2267, %v2379
    %v2381 = vpop.f32.mrb[0].mxu0
    %v2382 = vadd.f32 %v2269, %v2381
    %v2383 = vpop.f32.mrb[0].mxu0
    %v2384 = vadd.f32 %v2271, %v2383
    %v2385 = vpop.f32.mrb[0].mxu0
    %v2386 = vadd.f32 %v2273, %v2385
    %2387 = vmatprep.mubr.bf16.mxu0 %v1555
    %2388 = vmatmul.mubr.bf16.gmra.mrb[0].mxu0 %v1554
    %v2389 = vpop.f32.mrb[0].mxu0
    %v2390 = vadd.f32 %v2277, %v2389
    %v2391 = vpop.f32.mrb[0].mxu0
    %v2392 = vadd.f32 %v2279, %v2391
    %v2393 = vpop.f32.mrb[0].mxu0
    %v2394 = vadd.f32 %v2281, %v2393
    %v2395 = vpop.f32.mrb[0].mxu0
    %v2396 = vadd.f32 %v2283, %v2395
    %2397 = vmatprep.mubr.bf16.mxu0 %v1562
    %2398 = vmatmul.mubr.bf16.gmra.mrb[0].mxu0 %v1561
    %v2399 = vpop.f32.mrb[0].mxu0
    %v2400 = vadd.f32 %v2287, %v2399
    %v2401 = vpop.f32.mrb[0].mxu0
    %v2402 = vadd.f32 %v2289, %v2401
    %v2403 = vpop.f32.mrb[0].mxu0
    %v2404 = vadd.f32 %v2291, %v2403
    %v2405 = vpop.f32.mrb[0].mxu0
    %v2406 = vadd.f32 %v2293, %v2405
    %2407 = vmatprep.mubr.bf16.mxu0 %v1569
    %2408 = vmatmul.mubr.bf16.gmra.mrb[0].mxu0 %v1568
    %v2409 = vpop.f32.mrb[0].mxu0
    %v2410 = vadd.f32 %v2297, %v2409
    %v2411 = vpop.f32.mrb[0].mxu0
    %v2412 = vadd.f32 %v2299, %v2411
    %v2413 = vpop.f32.mrb[0].mxu0
    %v2414 = vadd.f32 %v2301, %v2413
    %v2415 = vpop.f32.mrb[0].mxu0
    %v2416 = vadd.f32 %v2303, %v2415
    %2417 = vmatprep.mubr.bf16.mxu0 %v1576
    %2418 = vmatmul.mubr.bf16.gmra.mrb[0].mxu0 %v1575
    %v2419 = vpop.f32.mrb[0].mxu0
    %v2420 = vadd.f32 %v2307, %v2419
    %v2421 = vpop.f32.mrb[0].mxu0
    %v2422 = vadd.f32 %v2309, %v2421
    %v2423 = vpop.f32.mrb[0].mxu0
    %v2424 = vadd.f32 %v2311, %v2423
    %v2425 = vpop.f32.mrb[0].mxu0
    %v2426 = vadd.f32 %v2313, %v2425
    %2427 = vmatprep.mubr.bf16.mxu0 %v1583
    %2428 = vmatmul.mubr.bf16.gmra.mrb[0].mxu0 %v1582
    %v2429 = vpop.f32.mrb[0].mxu0
    %v2430 = vadd.f32 %v2317, %v2429
    %v2431 = vpop.f32.mrb[0].mxu0
    %v2432 = vadd.f32 %v2319, %v2431
    %v2433 = vpop.f32.mrb[0].mxu0
    %v2434 = vadd.f32 %v2321, %v2433
    %v2435 = vpop.f32.mrb[0].mxu0
    %v2436 = vadd.f32 %v2323, %v2435
    %2437 = vdwg.mxu0
    %2438 = vmatprep.subr.bf16.mxu0 %v2056
    %2439 = vmatpush1.bf16.msra.mxu0 %v2055
    %2440 = vmatprep.subr.bf16.mxu0 %v2058
    %2441 = vmatpush1.bf16.msra.mxu0 %v2057
    %2442 = vmatprep.subr.bf16.mxu0 %v2060
    %2443 = vmatpush1.bf16.msra.mxu0 %v2059
    %2444 = vmatprep.subr.bf16.mxu0 %v2062
    %2445 = vmatpush1.bf16.msra.mxu0 %v2061
    %2446 = vmatprep.subr.bf16.mxu0 %v2064
    %2447 = vmatpush1.bf16.msra.mxu0 %v2063
    %2448 = vmatprep.subr.bf16.mxu0 %v2066
    %2449 = vmatpush1.bf16.msra.mxu0 %v2065
    %2450 = vmatprep.subr.bf16.mxu0 %v2068
    %2451 = vmatpush1.bf16.msra.mxu0 %v2067
    %2452 = vmatprep.subr.bf16.mxu0 %v2070
    %2453 = vmatpush1.bf16.msra.mxu0 %v2069
    %2454 = vmatprep.subr.bf16.mxu0 %v2072
    %2455 = vmatpush1.bf16.msra.mxu0 %v2071
    %2456 = vmatprep.subr.bf16.mxu0 %v2074
    %2457 = vmatpush1.bf16.msra.mxu0 %v2073
    %2458 = vmatprep.subr.bf16.mxu0 %v2076
    %2459 = vmatpush1.bf16.msra.mxu0 %v2075
    %2460 = vmatprep.subr.bf16.mxu0 %v2078
    %2461 = vmatpush1.bf16.msra.mxu0 %v2077
    %2462 = vmatprep.subr.bf16.mxu0 %v2080
    %2463 = vmatpush1.bf16.msra.mxu0 %v2079
    %2464 = vmatprep.subr.bf16.mxu0 %v2082
    %2465 = vmatpush1.bf16.msra.mxu0 %v2081
    %2466 = vmatprep.subr.bf16.mxu0 %v2084
    %2467 = vmatpush1.bf16.msra.mxu0 %v2083
    %2468 = vmatprep.subr.bf16.mxu0 %v2086
    %2469 = vmatpush1.bf16.msra.mxu0 %v2085
    %2470 = vmatprep.mubr.bf16.mxu0 %v1536
    %2471 = vmatmul.mubr.bf16.gmra.mrb[0].mxu0 %v1535
    %v2472 = vpop.f32.mrb[0].mxu0
    %v2473 = vadd.f32 %v2360, %v2472
    %v2474 = vpop.f32.mrb[0].mxu0
    %v2475 = vadd.f32 %v2362, %v2474
    %v2476 = vpop.f32.mrb[0].mxu0
    %v2477 = vadd.f32 %v2364, %v2476
    %v2478 = vpop.f32.mrb[0].mxu0
    %v2479 = vadd.f32 %v2366, %v2478
    %2480 = vmatprep.mubr.bf16.mxu0 %v1543
    %2481 = vmatmul.mubr.bf16.gmra.mrb[0].mxu0 %v1542
    %v2482 = vpop.f32.mrb[0].mxu0
    %v2483 = vadd.f32 %v2370, %v2482
    %v2484 = vpop.f32.mrb[0].mxu0
    %v2485 = vadd.f32 %v2372, %v2484
    %v2486 = vpop.f32.mrb[0].mxu0
    %v2487 = vadd.f32 %v2374, %v2486
    %v2488 = vpop.f32.mrb[0].mxu0
    %v2489 = vadd.f32 %v2376, %v2488
    %2490 = vmatprep.mubr.bf16.mxu0 %v1550
    %2491 = vmatmul.mubr.bf16.gmra.mrb[0].mxu0 %v1549
    %v2492 = vpop.f32.mrb[0].mxu0
    %v2493 = vadd.f32 %v2380, %v2492
    %v2494 = vpop.f32.mrb[0].mxu0
    %v2495 = vadd.f32 %v2382, %v2494
    %v2496 = vpop.f32.mrb[0].mxu0
    %v2497 = vadd.f32 %v2384, %v2496
    %v2498 = vpop.f32.mrb[0].mxu0
    %v2499 = vadd.f32 %v2386, %v2498
    %2500 = vmatprep.mubr.bf16.mxu0 %v1557
    %2501 = vmatmul.mubr.bf16.gmra.mrb[0].mxu0 %v1556
    %v2502 = vpop.f32.mrb[0].mxu0
    %v2503 = vadd.f32 %v2390, %v2502
    %v2504 = vpop.f32.mrb[0].mxu0
    %v2505 = vadd.f32 %v2392, %v2504
    %v2506 = vpop.f32.mrb[0].mxu0
    %v2507 = vadd.f32 %v2394, %v2506
    %v2508 = vpop.f32.mrb[0].mxu0
    %v2509 = vadd.f32 %v2396, %v2508
    %2510 = vmatprep.mubr.bf16.mxu0 %v1564
    %2511 = vmatmul.mubr.bf16.gmra.mrb[0].mxu0 %v1563
    %v2512 = vpop.f32.mrb[0].mxu0
    %v2513 = vadd.f32 %v2400, %v2512
    %v2514 = vpop.f32.mrb[0].mxu0
    %v2515 = vadd.f32 %v2402, %v2514
    %v2516 = vpop.f32.mrb[0].mxu0
    %v2517 = vadd.f32 %v2404, %v2516
    %v2518 = vpop.f32.mrb[0].mxu0
    %v2519 = vadd.f32 %v2406, %v2518
    %2520 = vmatprep.mubr.bf16.mxu0 %v1571
    %2521 = vmatmul.mubr.bf16.gmra.mrb[0].mxu0 %v1570
    %v2522 = vpop.f32.mrb[0].mxu0
    %v2523 = vadd.f32 %v2410, %v2522
    %v2524 = vpop.f32.mrb[0].mxu0
    %v2525 = vadd.f32 %v2412, %v2524
    %v2526 = vpop.f32.mrb[0].mxu0
    %v2527 = vadd.f32 %v2414, %v2526
    %v2528 = vpop.f32.mrb[0].mxu0
    %v2529 = vadd.f32 %v2416, %v2528
    %2530 = vmatprep.mubr.bf16.mxu0 %v1578
    %2531 = vmatmul.mubr.bf16.gmra.mrb[0].mxu0 %v1577
    %v2532 = vpop.f32.mrb[0].mxu0
    %v2533 = vadd.f32 %v2420, %v2532
    %v2534 = vpop.f32.mrb[0].mxu0
    %v2535 = vadd.f32 %v2422, %v2534
    %v2536 = vpop.f32.mrb[0].mxu0
    %v2537 = vadd.f32 %v2424, %v2536
    %v2538 = vpop.f32.mrb[0].mxu0
    %v2539 = vadd.f32 %v2426, %v2538
    %2540 = vmatprep.mubr.bf16.mxu0 %v1585
    %2541 = vmatmul.mubr.bf16.gmra.mrb[0].mxu0 %v1584
    %v2542 = vpop.f32.mrb[0].mxu0
    %v2543 = vadd.f32 %v2430, %v2542
    %v2544 = vpop.f32.mrb[0].mxu0
    %v2545 = vadd.f32 %v2432, %v2544
    %v2546 = vpop.f32.mrb[0].mxu0
    %v2547 = vadd.f32 %v2434, %v2546
    %v2548 = vpop.f32.mrb[0].mxu0
    %v2549 = vadd.f32 %v2436, %v2548
    %2550 = vdwg.mxu0
    %2551 = vmatprep.subr.bf16.mxu0 %v2088
    %2552 = vmatpush1.bf16.msra.mxu0 %v2087
    %2553 = vmatprep.subr.bf16.mxu0 0
    %2554 = vmatpush1.bf16.msra.mxu0 0
    %2555 = vmatprep.subr.bf16.mxu0 0
    %2556 = vmatpush1.bf16.msra.mxu0 0
    %2557 = vmatprep.subr.bf16.mxu0 0
    %2558 = vmatpush1.bf16.msra.mxu0 0
    %2559 = vmatprep.subr.bf16.mxu0 0
    %2560 = vmatpush1.bf16.msra.mxu0 0
    %2561 = vmatprep.subr.bf16.mxu0 0
    %2562 = vmatpush1.bf16.msra.mxu0 0
    %2563 = vmatprep.subr.bf16.mxu0 0
    %2564 = vmatpush1.bf16.msra.mxu0 0
    %2565 = vmatprep.subr.bf16.mxu0 0
    %2566 = vmatpush1.bf16.msra.mxu0 0
    %2567 = vmatprep.subr.bf16.mxu0 0
    %2568 = vmatpush1.bf16.msra.mxu0 0
    %2569 = vmatprep.subr.bf16.mxu0 0
    %2570 = vmatpush1.bf16.msra.mxu0 0
    %2571 = vmatprep.subr.bf16.mxu0 0
    %2572 = vmatpush1.bf16.msra.mxu0 0
    %2573 = vmatprep.subr.bf16.mxu0 0
    %2574 = vmatpush1.bf16.msra.mxu0 0
    %2575 = vmatprep.subr.bf16.mxu0 0
    %2576 = vmatpush1.bf16.msra.mxu0 0
    %2577 = vmatprep.subr.bf16.mxu0 0
    %2578 = vmatpush1.bf16.msra.mxu0 0
    %2579 = vmatprep.subr.bf16.mxu0 0
    %2580 = vmatpush1.bf16.msra.mxu0 0
    %2581 = vmatprep.subr.bf16.mxu0 0
    %2582 = vmatpush1.bf16.msra.mxu0 0
    %2583 = vmatprep.mubr.bf16.mxu0 0
    %2584 = vmatmul.mubr.bf16.gmra.mrb[0].mxu0 %v2189
    %v2585 = vpop.f32.mrb[0].mxu0
    %v2586 = vadd.f32 %v2473, %v2585
    %v2587 = vpop.f32.mrb[0].mxu0
    %v2588 = vadd.f32 %v2475, %v2587
    %v2589 = vpop.f32.mrb[0].mxu0
    %v2590 = vadd.f32 %v2477, %v2589
    %v2591 = vpop.f32.mrb[0].mxu0
    %v2592 = vadd.f32 %v2479, %v2591
    %2593 = vmatprep.mubr.bf16.mxu0 0
    %2594 = vmatmul.mubr.bf16.gmra.mrb[0].mxu0 %v2192
    %v2595 = vpop.f32.mrb[0].mxu0
    %v2596 = vadd.f32 %v2483, %v2595
    %v2597 = vpop.f32.mrb[0].mxu0
    %v2598 = vadd.f32 %v2485, %v2597
    %v2599 = vpop.f32.mrb[0].mxu0
    %v2600 = vadd.f32 %v2487, %v2599
    %v2601 = vpop.f32.mrb[0].mxu0
    %v2602 = vadd.f32 %v2489, %v2601
    %2603 = vmatprep.mubr.bf16.mxu0 0
    %2604 = vmatmul.mubr.bf16.gmra.mrb[0].mxu0 %v2195
    %v2605 = vpop.f32.mrb[0].mxu0
    %v2606 = vadd.f32 %v2493, %v2605
    %v2607 = vpop.f32.mrb[0].mxu0
    %v2608 = vadd.f32 %v2495, %v2607
    %v2609 = vpop.f32.mrb[0].mxu0
    %v2610 = vadd.f32 %v2497, %v2609
    %v2611 = vpop.f32.mrb[0].mxu0
    %v2612 = vadd.f32 %v2499, %v2611
    %2613 = vmatprep.mubr.bf16.mxu0 0
    %2614 = vmatmul.mubr.bf16.gmra.mrb[0].mxu0 %v2198
    %v2615 = vpop.f32.mrb[0].mxu0
    %v2616 = vadd.f32 %v2503, %v2615
    %v2617 = vpop.f32.mrb[0].mxu0
    %v2618 = vadd.f32 %v2505, %v2617
    %v2619 = vpop.f32.mrb[0].mxu0
    %v2620 = vadd.f32 %v2507, %v2619
    %v2621 = vpop.f32.mrb[0].mxu0
    %v2622 = vadd.f32 %v2509, %v2621
    %2623 = vmatprep.mubr.bf16.mxu0 0
    %2624 = vmatmul.mubr.bf16.gmra.mrb[0].mxu0 %v2201
    %v2625 = vpop.f32.mrb[0].mxu0
    %v2626 = vadd.f32 %v2513, %v2625
    %v2627 = vpop.f32.mrb[0].mxu0
    %v2628 = vadd.f32 %v2515, %v2627
    %v2629 = vpop.f32.mrb[0].mxu0
    %v2630 = vadd.f32 %v2517, %v2629
    %v2631 = vpop.f32.mrb[0].mxu0
    %v2632 = vadd.f32 %v2519, %v2631
    %2633 = vmatprep.mubr.bf16.mxu0 0
    %2634 = vmatmul.mubr.bf16.gmra.mrb[0].mxu0 %v2204
    %v2635 = vpop.f32.mrb[0].mxu0
    %v2636 = vadd.f32 %v2523, %v2635
    %v2637 = vpop.f32.mrb[0].mxu0
    %v2638 = vadd.f32 %v2525, %v2637
    %v2639 = vpop.f32.mrb[0].mxu0
    %v2640 = vadd.f32 %v2527, %v2639
    %v2641 = vpop.f32.mrb[0].mxu0
    %v2642 = vadd.f32 %v2529, %v2641
    %2643 = vmatprep.mubr.bf16.mxu0 0
    %2644 = vmatmul.mubr.bf16.gmra.mrb[0].mxu0 %v2207
    %v2645 = vpop.f32.mrb[0].mxu0
    %v2646 = vadd.f32 %v2533, %v2645
    %v2647 = vpop.f32.mrb[0].mxu0
    %v2648 = vadd.f32 %v2535, %v2647
    %v2649 = vpop.f32.mrb[0].mxu0
    %v2650 = vadd.f32 %v2537, %v2649
    %v2651 = vpop.f32.mrb[0].mxu0
    %v2652 = vadd.f32 %v2539, %v2651
    %2653 = vmatprep.mubr.bf16.mxu0 0
    %2654 = vmatmul.mubr.bf16.gmra.mrb[0].mxu0 %v2210
    %v2655 = vpop.f32.mrb[0].mxu0
    %v2656 = vadd.f32 %v2543, %v2655
    %v2657 = vpop.f32.mrb[0].mxu0
    %v2658 = vadd.f32 %v2545, %v2657
    %v2659 = vpop.f32.mrb[0].mxu0
    %v2660 = vadd.f32 %v2547, %v2659
    %v2661 = vpop.f32.mrb[0].mxu0
    %v2662 = vadd.f32 %v2549, %v2661
    %2663 = vdwg.mxu0
    %v2664 = vmax.f32 %v2586, 0.0
    %v2665 = vmax.f32 %v2588, 0.0
    %v2666 = vmax.f32 %v2590, 0.0
    %v2667 = vmax.f32 %v2592, 0.0
    %v2668 = vmax.f32 %v2596, 0.0
    %v2669 = vmax.f32 %v2598, 0.0
    %v2670 = vmax.f32 %v2600, 0.0
    %v2671 = vmax.f32 %v2602, 0.0
    %v2672 = vmax.f32 %v2606, 0.0
    %v2673 = vmax.f32 %v2608, 0.0
    %v2674 = vmax.f32 %v2610, 0.0
    %v2675 = vmax.f32 %v2612, 0.0
    %v2676 = vmax.f32 %v2616, 0.0
    %v2677 = vmax.f32 %v2618, 0.0
    %v2678 = vmax.f32 %v2620, 0.0
    %v2679 = vmax.f32 %v2622, 0.0
    %v2680 = vmax.f32 %v2626, 0.0
    %v2681 = vmax.f32 %v2628, 0.0
    %v2682 = vmax.f32 %v2630, 0.0
    %v2683 = vmax.f32 %v2632, 0.0
    %v2684 = vmax.f32 %v2636, 0.0
    %v2685 = vmax.f32 %v2638, 0.0
    %v2686 = vmax.f32 %v2640, 0.0
    %v2687 = vmax.f32 %v2642, 0.0
    %v2688 = vmax.f32 %v2646, 0.0
    %v2689 = vmax.f32 %v2648, 0.0
    %v2690 = vmax.f32 %v2650, 0.0
    %v2691 = vmax.f32 %v2652, 0.0
    %v2692 = vmax.f32 %v2656, 0.0
    %v2693 = vmax.f32 %v2658, 0.0
    %v2694 = vmax.f32 %v2660, 0.0
    %v2695 = vmax.f32 %v2662, 0.0
    %v2696 = vpack.c.bf16 %v2666, %v2664
    %v2697 = vpack.c.bf16 %v2667, %v2665
    %v2698 = vpack.c.bf16 %v2670, %v2668
    %v2699 = vpack.c.bf16 %v2671, %v2669
    %v2700 = vpack.c.bf16 %v2674, %v2672
    %v2701 = vpack.c.bf16 %v2675, %v2673
    %v2702 = vpack.c.bf16 %v2678, %v2676
    %v2703 = vpack.c.bf16 %v2679, %v2677
    %v2704 = vpack.c.bf16 %v2682, %v2680
    %v2705 = vpack.c.bf16 %v2683, %v2681
    %v2706 = vpack.c.bf16 %v2686, %v2684
    %v2707 = vpack.c.bf16 %v2687, %v2685
    %v2708 = vpack.c.bf16 %v2690, %v2688
    %v2709 = vpack.c.bf16 %v2691, %v2689
    %v2710 = vpack.c.bf16 %v2694, %v2692
    %v2711 = vpack.c.bf16 %v2695, %v2693
    %v2712 = vld [vmem:[%s3] sm:$0xf]
    %v2713 = vld [vmem:[%s3 + $0x4] sm:$0xf]
    %v2714 = vld [vmem:[%s3 + $0x8] sm:$0xf]
    %v2715 = vld [vmem:[%s3 + $0xc] sm:$0xf]
    %v2716 = vld [vmem:[%s3 + $0x10] sm:$0xf]
    %v2717 = vld [vmem:[%s3 + $0x14] sm:$0xf]
    %v2718 = vld [vmem:[%s3 + $0x18] sm:$0xf]
    %v2719 = vld [vmem:[%s3 + $0x1c] sm:$0xf]
    %v2720 = vld [vmem:[%s3 + $0x20] sm:$0xf]
    %v2721 = vld [vmem:[%s3 + $0x24] sm:$0xf]
    %v2722 = vld [vmem:[%s3 + $0x28] sm:$0xf]
    %v2723 = vld [vmem:[%s3 + $0x2c] sm:$0xf]
    %v2724 = vld [vmem:[%s3 + $0x30] sm:$0xf]
    %v2725 = vld [vmem:[%s3 + $0x34] sm:$0xf]
    %v2726 = vld [vmem:[%s3 + $0x38] sm:$0xf]
    %v2727 = vld [vmem:[%s3 + $0x3c] sm:$0xf]
    %v2728 = vld [vmem:[%s3 + $0x40] sm:$0xf]
    %v2729 = vld [vmem:[%s3 + $0x44] sm:$0xf]
    %v2730 = vld [vmem:[%s3 + $0x48] sm:$0xf]
    %v2731 = vld [vmem:[%s3 + $0x4c] sm:$0xf]
    %v2732 = vld [vmem:[%s3 + $0x50] sm:$0xf]
    %v2733 = vld [vmem:[%s3 + $0x54] sm:$0xf]
    %v2734 = vld [vmem:[%s3 + $0x58] sm:$0xf]
    %v2735 = vld [vmem:[%s3 + $0x5c] sm:$0xf]
    %v2736 = vld [vmem:[%s3 + $0x60] sm:$0xf]
    %v2737 = vld [vmem:[%s3 + $0x64] sm:$0xf]
    %v2738 = vld [vmem:[%s3 + $0x68] sm:$0xf]
    %v2739 = vld [vmem:[%s3 + $0x6c] sm:$0xf]
    %v2740 = vld [vmem:[%s3 + $0x70] sm:$0xf]
    %v2741 = vld [vmem:[%s3 + $0x74] sm:$0xf]
    %v2742 = vld [vmem:[%s3 + $0x78] sm:$0xf]
    %v2743 = vld [vmem:[%s3 + $0x7c] sm:$0xf]
    %v2744 = vld [vmem:[%s4] sm:$0x1]
    %v2746 = vlaneseq
    %v2747 = vshrl.u32 %v2746, 7
    %v2748 = vsub.s32 0, %v2747
    %v2749 = vrot.slane %v2744, %v2748
    %v2783 = vunpack.c.l.b16 %v2712
    %v2784 = vunpack.c.l.b16 %v2713
    %v2785 = vunpack.c.l.b16 %v2714
    %v2786 = vunpack.c.l.b16 %v2715
    %v2787 = vunpack.c.l.b16 %v2716
    %v2788 = vunpack.c.l.b16 %v2717
    %v2789 = vunpack.c.l.b16 %v2718
    %v2790 = vunpack.c.l.b16 %v2719
    %v2791 = vunpack.c.l.b16 %v2720
    %v2792 = vunpack.c.l.b16 %v2721
    %v2793 = vunpack.c.l.b16 %v2722
    %v2794 = vunpack.c.l.b16 %v2723
    %v2795 = vunpack.c.l.b16 %v2724
    %v2796 = vunpack.c.l.b16 %v2725
    %v2797 = vunpack.c.l.b16 %v2726
    %v2798 = vunpack.c.l.b16 %v2727
    %v2799 = vunpack.c.l.b16 %v2728
    %v2800 = vunpack.c.l.b16 %v2729
    %v2801 = vunpack.c.l.b16 %v2730
    %v2802 = vunpack.c.l.b16 %v2731
    %v2803 = vunpack.c.l.b16 %v2732
    %v2804 = vunpack.c.l.b16 %v2733
    %v2805 = vunpack.c.l.b16 %v2734
    %v2806 = vunpack.c.l.b16 %v2735
    %v2807 = vunpack.c.l.b16 %v2736
    %v2808 = vunpack.c.l.b16 %v2737
    %v2809 = vunpack.c.l.b16 %v2738
    %v2810 = vunpack.c.l.b16 %v2739
    %v2811 = vunpack.c.l.b16 %v2740
    %v2812 = vunpack.c.l.b16 %v2741
    %v2813 = vunpack.c.l.b16 %v2742
    %v2814 = vunpack.c.l.b16 %v2743
    %v2815 = vpack.c.b16 %v2784, %v2783
    %v2816 = vpack.c.b16 %v2786, %v2785
    %v2817 = vpack.c.b16 %v2788, %v2787
    %v2818 = vpack.c.b16 %v2790, %v2789
    %v2819 = vpack.c.b16 %v2792, %v2791
    %v2820 = vpack.c.b16 %v2794, %v2793
    %v2821 = vpack.c.b16 %v2796, %v2795
    %v2822 = vpack.c.b16 %v2798, %v2797
    %v2823 = vpack.c.b16 %v2800, %v2799
    %v2824 = vpack.c.b16 %v2802, %v2801
    %v2825 = vpack.c.b16 %v2804, %v2803
    %v2826 = vpack.c.b16 %v2806, %v2805
    %v2827 = vpack.c.b16 %v2808, %v2807
    %v2828 = vpack.c.b16 %v2810, %v2809
    %v2829 = vpack.c.b16 %v2812, %v2811
    %v2830 = vpack.c.b16 %v2814, %v2813
    %2847 = vmatprep.subr.bf16.mxu0 0
    %2848 = vmatpush1.bf16.msra.mxu0 %v2815
    %2849 = vmatprep.subr.bf16.mxu0 0
    %2850 = vmatpush1.bf16.msra.mxu0 %v2816
    %2851 = vmatprep.subr.bf16.mxu0 0
    %2852 = vmatpush1.bf16.msra.mxu0 %v2817
    %2853 = vmatprep.subr.bf16.mxu0 0
    %2854 = vmatpush1.bf16.msra.mxu0 %v2818
    %2855 = vmatprep.subr.bf16.mxu0 0
    %2856 = vmatpush1.bf16.msra.mxu0 %v2819
    %2857 = vmatprep.subr.bf16.mxu0 0
    %2858 = vmatpush1.bf16.msra.mxu0 %v2820
    %2859 = vmatprep.subr.bf16.mxu0 0
    %2860 = vmatpush1.bf16.msra.mxu0 %v2821
    %2861 = vmatprep.subr.bf16.mxu0 0
    %2862 = vmatpush1.bf16.msra.mxu0 %v2822
    %2863 = vmatprep.subr.bf16.mxu0 0
    %2864 = vmatpush1.bf16.msra.mxu0 %v2823
    %2865 = vmatprep.subr.bf16.mxu0 0
    %2866 = vmatpush1.bf16.msra.mxu0 %v2824
    %2867 = vmatprep.subr.bf16.mxu0 0
    %2868 = vmatpush1.bf16.msra.mxu0 %v2825
    %2869 = vmatprep.subr.bf16.mxu0 0
    %2870 = vmatpush1.bf16.msra.mxu0 %v2826
    %2871 = vmatprep.subr.bf16.mxu0 0
    %2872 = vmatpush1.bf16.msra.mxu0 %v2827
    %2873 = vmatprep.subr.bf16.mxu0 0
    %2874 = vmatpush1.bf16.msra.mxu0 %v2828
    %2875 = vmatprep.subr.bf16.mxu0 0
    %2876 = vmatpush1.bf16.msra.mxu0 %v2829
    %2877 = vmatprep.subr.bf16.mxu0 0
    %2878 = vmatpush1.bf16.msra.mxu0 %v2830
    %2879 = vmatprep.mubr.bf16.mxu0 %v2697
    %2880 = vmatmul.mubr.bf16.gmra.mrb[0].mxu0 %v2696
    %v2881 = vpop.f32.mrb[0].mxu0
    %v2882 = vadd.f32 %v2749, %v2881
    %v2883 = vpop.f32.mrb[0].mxu0
    %v2884 = vpop.f32.mrb[0].mxu0
    %v2885 = vadd.f32 %v2749, %v2884
    %v2886 = vpop.f32.mrb[0].mxu0
    %2887 = vmatprep.mubr.bf16.mxu0 %v2699
    %2888 = vmatmul.mubr.bf16.gmra.mrb[0].mxu0 %v2698
    %v2889 = vpop.f32.mrb[0].mxu0
    %v2890 = vadd.f32 %v2749, %v2889
    %v2891 = vpop.f32.mrb[0].mxu0
    %v2892 = vpop.f32.mrb[0].mxu0
    %v2893 = vadd.f32 %v2749, %v2892
    %v2894 = vpop.f32.mrb[0].mxu0
    %2895 = vmatprep.mubr.bf16.mxu0 %v2701
    %2896 = vmatmul.mubr.bf16.gmra.mrb[0].mxu0 %v2700
    %v2897 = vpop.f32.mrb[0].mxu0
    %v2898 = vadd.f32 %v2749, %v2897
    %v2899 = vpop.f32.mrb[0].mxu0
    %v2900 = vpop.f32.mrb[0].mxu0
    %v2901 = vadd.f32 %v2749, %v2900
    %v2902 = vpop.f32.mrb[0].mxu0
    %2903 = vmatprep.mubr.bf16.mxu0 %v2703
    %2904 = vmatmul.mubr.bf16.gmra.mrb[0].mxu0 %v2702
    %v2905 = vpop.f32.mrb[0].mxu0
    %v2906 = vadd.f32 %v2749, %v2905
    %v2907 = vpop.f32.mrb[0].mxu0
    %v2908 = vpop.f32.mrb[0].mxu0
    %v2909 = vadd.f32 %v2749, %v2908
    %v2910 = vpop.f32.mrb[0].mxu0
    %2911 = vmatprep.mubr.bf16.mxu0 %v2705
    %2912 = vmatmul.mubr.bf16.gmra.mrb[0].mxu0 %v2704
    %v2913 = vpop.f32.mrb[0].mxu0
    %v2914 = vadd.f32 %v2749, %v2913
    %v2915 = vpop.f32.mrb[0].mxu0
    %v2916 = vpop.f32.mrb[0].mxu0
    %v2917 = vadd.f32 %v2749, %v2916
    %v2918 = vpop.f32.mrb[0].mxu0
    %2919 = vmatprep.mubr.bf16.mxu0 %v2707
    %2920 = vmatmul.mubr.bf16.gmra.mrb[0].mxu0 %v2706
    %v2921 = vpop.f32.mrb[0].mxu0
    %v2922 = vadd.f32 %v2749, %v2921
    %v2923 = vpop.f32.mrb[0].mxu0
    %v2924 = vpop.f32.mrb[0].mxu0
    %v2925 = vadd.f32 %v2749, %v2924
    %v2926 = vpop.f32.mrb[0].mxu0
    %2927 = vmatprep.mubr.bf16.mxu0 %v2709
    %2928 = vmatmul.mubr.bf16.gmra.mrb[0].mxu0 %v2708
    %v2929 = vpop.f32.mrb[0].mxu0
    %v2930 = vadd.f32 %v2749, %v2929
    %v2931 = vpop.f32.mrb[0].mxu0
    %v2932 = vpop.f32.mrb[0].mxu0
    %v2933 = vadd.f32 %v2749, %v2932
    %v2934 = vpop.f32.mrb[0].mxu0
    %2935 = vmatprep.mubr.bf16.mxu0 %v2711
    %2936 = vmatmul.mubr.bf16.gmra.mrb[0].mxu0 %v2710
    %v2937 = vpop.f32.mrb[0].mxu0
    %v2938 = vadd.f32 %v2749, %v2937
    %v2939 = vpop.f32.mrb[0].mxu0
    %v2940 = vpop.f32.mrb[0].mxu0
    %v2941 = vadd.f32 %v2749, %v2940
    %v2942 = vpop.f32.mrb[0].mxu0
    %2943 = vdwg.mxu0
    %v2944 = vmax.f32 %v2882, 0.0
    %v2945 = vmax.f32 %v2885, 0.0
    %v2946 = vmax.f32 %v2890, 0.0
    %v2947 = vmax.f32 %v2893, 0.0
    %v2948 = vmax.f32 %v2898, 0.0
    %v2949 = vmax.f32 %v2901, 0.0
    %v2950 = vmax.f32 %v2906, 0.0
    %v2951 = vmax.f32 %v2909, 0.0
    %v2952 = vmax.f32 %v2914, 0.0
    %v2953 = vmax.f32 %v2917, 0.0
    %v2954 = vmax.f32 %v2922, 0.0
    %v2955 = vmax.f32 %v2925, 0.0
    %v2956 = vmax.f32 %v2930, 0.0
    %v2957 = vmax.f32 %v2933, 0.0
    %v2958 = vmax.f32 %v2938, 0.0
    %v2959 = vmax.f32 %v2941, 0.0
    %v2960 = vpack.c.bf16 %v2945, %v2944
    %v2961 = vpack.c.bf16 %v2947, %v2946
    %v2962 = vpack.c.bf16 %v2949, %v2948
    %v2963 = vpack.c.bf16 %v2951, %v2950
    %v2964 = vpack.c.bf16 %v2953, %v2952
    %v2965 = vpack.c.bf16 %v2955, %v2954
    %v2966 = vpack.c.bf16 %v2957, %v2956
    %v2967 = vpack.c.bf16 %v2959, %v2958
    %v2968 = vld [vmem:[%s5] sm:$0xf]
    %v2969 = vld [vmem:[%s5 + $0x4] sm:$0xf]
    %v2970 = vld [vmem:[%s5 + $0x8] sm:$0xf]
    %v2971 = vld [vmem:[%s5 + $0xc] sm:$0xf]
    %v2972 = vld [vmem:[%s5 + $0x10] sm:$0xf]
    %v2973 = vld [vmem:[%s5 + $0x14] sm:$0xf]
    %v2974 = vld [vmem:[%s5 + $0x18] sm:$0xf]
    %v2975 = vld [vmem:[%s5 + $0x1c] sm:$0xf]
    %v2976 = vld [vmem:[%s5 + $0x20] sm:$0xf]
    %v2977 = vld [vmem:[%s5 + $0x24] sm:$0xf]
    %v2978 = vld [vmem:[%s5 + $0x28] sm:$0xf]
    %v2979 = vld [vmem:[%s5 + $0x2c] sm:$0xf]
    %v2980 = vld [vmem:[%s5 + $0x30] sm:$0xf]
    %v2981 = vld [vmem:[%s5 + $0x34] sm:$0xf]
    %v2982 = vld [vmem:[%s5 + $0x38] sm:$0xf]
    %v2983 = vld [vmem:[%s5 + $0x3c] sm:$0xf]
    %v2984 = vld [vmem:[%s6] sm:$0x1]
    %v2986 = vlaneseq
    %v2987 = vshrl.u32 %v2986, 7
    %v2988 = vsub.s32 0, %v2987
    %v2989 = vrot.slane %v2984, %v2988
    %v3007 = vunpack.c.l.b16 %v2968
    %v3008 = vunpack.c.l.b16 %v2969
    %v3009 = vunpack.c.l.b16 %v2970
    %v3010 = vunpack.c.l.b16 %v2971
    %v3011 = vunpack.c.l.b16 %v2972
    %v3012 = vunpack.c.l.b16 %v2973
    %v3013 = vunpack.c.l.b16 %v2974
    %v3014 = vunpack.c.l.b16 %v2975
    %v3015 = vunpack.c.l.b16 %v2976
    %v3016 = vunpack.c.l.b16 %v2977
    %v3017 = vunpack.c.l.b16 %v2978
    %v3018 = vunpack.c.l.b16 %v2979
    %v3019 = vunpack.c.l.b16 %v2980
    %v3020 = vunpack.c.l.b16 %v2981
    %v3021 = vunpack.c.l.b16 %v2982
    %v3022 = vunpack.c.l.b16 %v2983
    %v3023 = vpack.c.b16 %v3008, %v3007
    %v3024 = vpack.c.b16 %v3010, %v3009
    %v3025 = vpack.c.b16 %v3012, %v3011
    %v3026 = vpack.c.b16 %v3014, %v3013
    %v3027 = vpack.c.b16 %v3016, %v3015
    %v3028 = vpack.c.b16 %v3018, %v3017
    %v3029 = vpack.c.b16 %v3020, %v3019
    %v3030 = vpack.c.b16 %v3022, %v3021
    %3039 = vmatprep.subr.bf16.mxu0 0
    %3040 = vmatpush1.bf16.msra.mxu0 %v3023
    %3041 = vmatprep.subr.bf16.mxu0 0
    %3042 = vmatpush1.bf16.msra.mxu0 %v3024
    %3043 = vmatprep.subr.bf16.mxu0 0
    %3044 = vmatpush1.bf16.msra.mxu0 %v3025
    %3045 = vmatprep.subr.bf16.mxu0 0
    %3046 = vmatpush1.bf16.msra.mxu0 %v3026
    %3047 = vmatprep.subr.bf16.mxu0 0
    %3048 = vmatpush1.bf16.msra.mxu0 %v3027
    %3049 = vmatprep.subr.bf16.mxu0 0
    %3050 = vmatpush1.bf16.msra.mxu0 %v3028
    %3051 = vmatprep.subr.bf16.mxu0 0
    %3052 = vmatpush1.bf16.msra.mxu0 %v3029
    %3053 = vmatprep.subr.bf16.mxu0 0
    %3054 = vmatpush1.bf16.msra.mxu0 %v3030
    %3055 = vmatprep.subr.bf16.mxu0 0
    %3056 = vmatpush1.bf16.msra.mxu0 0
    %3057 = vmatprep.subr.bf16.mxu0 0
    %3058 = vmatpush1.bf16.msra.mxu0 0
    %3059 = vmatprep.subr.bf16.mxu0 0
    %3060 = vmatpush1.bf16.msra.mxu0 0
    %3061 = vmatprep.subr.bf16.mxu0 0
    %3062 = vmatpush1.bf16.msra.mxu0 0
    %3063 = vmatprep.subr.bf16.mxu0 0
    %3064 = vmatpush1.bf16.msra.mxu0 0
    %3065 = vmatprep.subr.bf16.mxu0 0
    %3066 = vmatpush1.bf16.msra.mxu0 0
    %3067 = vmatprep.subr.bf16.mxu0 0
    %3068 = vmatpush1.bf16.msra.mxu0 0
    %3069 = vmatprep.subr.bf16.mxu0 0
    %3070 = vmatpush1.bf16.msra.mxu0 0
    %3071 = vmatprep.mubr.bf16.mxu0 0
    %3072 = vmatmul.mubr.bf16.gmra.mrb[0].mxu0 %v2960
    %v3073 = vpop.f32.mrb[0].mxu0
    %v3074 = vadd.f32 %v2989, %v3073
    %v3075 = vpop.f32.mrb[0].mxu0
    %v3076 = vpop.f32.mrb[0].mxu0
    %v3077 = vadd.f32 %v2989, %v3076
    %v3078 = vpop.f32.mrb[0].mxu0
    %3079 = vmatprep.mubr.bf16.mxu0 0
    %3080 = vmatmul.mubr.bf16.gmra.mrb[0].mxu0 %v2961
    %v3081 = vpop.f32.mrb[0].mxu0
    %v3082 = vadd.f32 %v2989, %v3081
    %v3083 = vpop.f32.mrb[0].mxu0
    %v3084 = vpop.f32.mrb[0].mxu0
    %v3085 = vadd.f32 %v2989, %v3084
    %v3086 = vpop.f32.mrb[0].mxu0
    %3087 = vmatprep.mubr.bf16.mxu0 0
    %3088 = vmatmul.mubr.bf16.gmra.mrb[0].mxu0 %v2962
    %v3089 = vpop.f32.mrb[0].mxu0
    %v3090 = vadd.f32 %v2989, %v3089
    %v3091 = vpop.f32.mrb[0].mxu0
    %v3092 = vpop.f32.mrb[0].mxu0
    %v3093 = vadd.f32 %v2989, %v3092
    %v3094 = vpop.f32.mrb[0].mxu0
    %3095 = vmatprep.mubr.bf16.mxu0 0
    %3096 = vmatmul.mubr.bf16.gmra.mrb[0].mxu0 %v2963
    %v3097 = vpop.f32.mrb[0].mxu0
    %v3098 = vadd.f32 %v2989, %v3097
    %v3099 = vpop.f32.mrb[0].mxu0
    %v3100 = vpop.f32.mrb[0].mxu0
    %v3101 = vadd.f32 %v2989, %v3100
    %v3102 = vpop.f32.mrb[0].mxu0
    %3103 = vmatprep.mubr.bf16.mxu0 0
    %3104 = vmatmul.mubr.bf16.gmra.mrb[0].mxu0 %v2964
    %v3105 = vpop.f32.mrb[0].mxu0
    %v3106 = vadd.f32 %v2989, %v3105
    %v3107 = vpop.f32.mrb[0].mxu0
    %v3108 = vpop.f32.mrb[0].mxu0
    %v3109 = vadd.f32 %v2989, %v3108
    %v3110 = vpop.f32.mrb[0].mxu0
    %3111 = vmatprep.mubr.bf16.mxu0 0
    %3112 = vmatmul.mubr.bf16.gmra.mrb[0].mxu0 %v2965
    %v3113 = vpop.f32.mrb[0].mxu0
    %v3114 = vadd.f32 %v2989, %v3113
    %v3115 = vpop.f32.mrb[0].mxu0
    %v3116 = vpop.f32.mrb[0].mxu0
    %v3117 = vadd.f32 %v2989, %v3116
    %v3118 = vpop.f32.mrb[0].mxu0
    %3119 = vmatprep.mubr.bf16.mxu0 0
    %3120 = vmatmul.mubr.bf16.gmra.mrb[0].mxu0 %v2966
    %v3121 = vpop.f32.mrb[0].mxu0
    %v3122 = vadd.f32 %v2989, %v3121
    %v3123 = vpop.f32.mrb[0].mxu0
    %v3124 = vpop.f32.mrb[0].mxu0
    %v3125 = vadd.f32 %v2989, %v3124
    %v3126 = vpop.f32.mrb[0].mxu0
    %3127 = vmatprep.mubr.bf16.mxu0 0
    %3128 = vmatmul.mubr.bf16.gmra.mrb[0].mxu0 %v2967
    %v3129 = vpop.f32.mrb[0].mxu0
    %v3130 = vadd.f32 %v2989, %v3129
    %v3131 = vpop.f32.mrb[0].mxu0
    %v3132 = vpop.f32.mrb[0].mxu0
    %v3133 = vadd.f32 %v2989, %v3132
    %v3134 = vpop.f32.mrb[0].mxu0
    %3135 = vdwg.mxu0
    %v3136 = vpack.c.bf16 %v3077, %v3074
    %v3137 = vpack.c.bf16 %v3085, %v3082
    %v3138 = vpack.c.bf16 %v3093, %v3090
    %v3139 = vpack.c.bf16 %v3101, %v3098
    %v3140 = vpack.c.bf16 %v3109, %v3106
    %v3141 = vpack.c.bf16 %v3117, %v3114
    %v3142 = vpack.c.bf16 %v3125, %v3122
    %v3143 = vpack.c.bf16 %v3133, %v3130
    %v3152 = vcombine.high %v3136, %v3136
    %v3154 = vunpack.c.l.s4 1966171168
    %v3155 = vunpack.c.0.s8 %v3154
    %v3156 = vlaneseq
    %v3157 = vshrl.u32 %v3156, 7
    %v3158 = vsub.s32 %v3155, %v3157
    %v3159 = vrot.slane %v3136, %v3158
    %v3161 = vunpack.c.l.s4 1966171168
    %v3162 = vunpack.c.0.s8 %v3161
    %v3163 = vlaneseq
    %v3164 = vshrl.u32 %v3163, 7
    %v3165 = vsub.s32 %v3162, %v3164
    %v3166 = vrot.slane %v3152, %v3165
    %v3167 = vcombine.high %v3159, %v3159
    %v3168 = vcombine.high %v3166, %v3166
    %v3170 = vunpack.c.l.s4 1966171168
    %v3171 = vunpack.c.0.s8 %v3170
    %v3172 = vlaneseq
    %v3173 = vshrl.u32 %v3172, 7
    %v3174 = vsub.s32 %v3171, %v3173
    %v3175 = vrot.slane %v3159, %v3174
    %v3177 = vunpack.c.l.s4 1966171168
    %v3178 = vunpack.c.0.s8 %v3177
    %v3179 = vlaneseq
    %v3180 = vshrl.u32 %v3179, 7
    %v3181 = vsub.s32 %v3178, %v3180
    %v3182 = vrot.slane %v3166, %v3181
    %v3184 = vunpack.c.l.s4 1966171168
    %v3185 = vunpack.c.0.s8 %v3184
    %v3186 = vlaneseq
    %v3187 = vshrl.u32 %v3186, 7
    %v3188 = vsub.s32 %v3185, %v3187
    %v3189 = vrot.slane %v3167, %v3188
    %v3191 = vunpack.c.l.s4 1966171168
    %v3192 = vunpack.c.0.s8 %v3191
    %v3193 = vlaneseq
    %v3194 = vshrl.u32 %v3193, 7
    %v3195 = vsub.s32 %v3192, %v3194
    %v3196 = vrot.slane %v3168, %v3195
    %v3197 = vcombine.high %v3175, %v3175
    %v3198 = vcombine.high %v3182, %v3182
    %v3199 = vcombine.high %v3189, %v3189
    %v3200 = vcombine.high %v3196, %v3196
    %v3201 = vcombine.high %v3137, %v3137
    %v3203 = vunpack.c.l.s4 1966171168
    %v3204 = vunpack.c.0.s8 %v3203
    %v3205 = vlaneseq
    %v3206 = vshrl.u32 %v3205, 7
    %v3207 = vsub.s32 %v3204, %v3206
    %v3208 = vrot.slane %v3137, %v3207
    %v3210 = vunpack.c.l.s4 1966171168
    %v3211 = vunpack.c.0.s8 %v3210
    %v3212 = vlaneseq
    %v3213 = vshrl.u32 %v3212, 7
    %v3214 = vsub.s32 %v3211, %v3213
    %v3215 = vrot.slane %v3201, %v3214
    %v3216 = vcombine.high %v3208, %v3208
    %v3217 = vcombine.high %v3215, %v3215
    %v3219 = vunpack.c.l.s4 1966171168
    %v3220 = vunpack.c.0.s8 %v3219
    %v3221 = vlaneseq
    %v3222 = vshrl.u32 %v3221, 7
    %v3223 = vsub.s32 %v3220, %v3222
    %v3224 = vrot.slane %v3208, %v3223
    %v3226 = vunpack.c.l.s4 1966171168
    %v3227 = vunpack.c.0.s8 %v3226
    %v3228 = vlaneseq
    %v3229 = vshrl.u32 %v3228, 7
    %v3230 = vsub.s32 %v3227, %v3229
    %v3231 = vrot.slane %v3215, %v3230
    %v3233 = vunpack.c.l.s4 1966171168
    %v3234 = vunpack.c.0.s8 %v3233
    %v3235 = vlaneseq
    %v3236 = vshrl.u32 %v3235, 7
    %v3237 = vsub.s32 %v3234, %v3236
    %v3238 = vrot.slane %v3216, %v3237
    %v3240 = vunpack.c.l.s4 1966171168
    %v3241 = vunpack.c.0.s8 %v3240
    %v3242 = vlaneseq
    %v3243 = vshrl.u32 %v3242, 7
    %v3244 = vsub.s32 %v3241, %v3243
    %v3245 = vrot.slane %v3217, %v3244
    %v3246 = vcombine.high %v3224, %v3224
    %v3247 = vcombine.high %v3231, %v3231
    %v3248 = vcombine.high %v3238, %v3238
    %v3249 = vcombine.high %v3245, %v3245
    %v3250 = vcombine.high %v3138, %v3138
    %v3252 = vunpack.c.l.s4 1966171168
    %v3253 = vunpack.c.0.s8 %v3252
    %v3254 = vlaneseq
    %v3255 = vshrl.u32 %v3254, 7
    %v3256 = vsub.s32 %v3253, %v3255
    %v3257 = vrot.slane %v3138, %v3256
    %v3259 = vunpack.c.l.s4 1966171168
    %v3260 = vunpack.c.0.s8 %v3259
    %v3261 = vlaneseq
    %v3262 = vshrl.u32 %v3261, 7
    %v3263 = vsub.s32 %v3260, %v3262
    %v3264 = vrot.slane %v3250, %v3263
    %v3265 = vcombine.high %v3257, %v3257
    %v3266 = vcombine.high %v3264, %v3264
    %v3268 = vunpack.c.l.s4 1966171168
    %v3269 = vunpack.c.0.s8 %v3268
    %v3270 = vlaneseq
    %v3271 = vshrl.u32 %v3270, 7
    %v3272 = vsub.s32 %v3269, %v3271
    %v3273 = vrot.slane %v3257, %v3272
    %v3275 = vunpack.c.l.s4 1966171168
    %v3276 = vunpack.c.0.s8 %v3275
    %v3277 = vlaneseq
    %v3278 = vshrl.u32 %v3277, 7
    %v3279 = vsub.s32 %v3276, %v3278
    %v3280 = vrot.slane %v3264, %v3279
    %v3282 = vunpack.c.l.s4 1966171168
    %v3283 = vunpack.c.0.s8 %v3282
    %v3284 = vlaneseq
    %v3285 = vshrl.u32 %v3284, 7
    %v3286 = vsub.s32 %v3283, %v3285
    %v3287 = vrot.slane %v3265, %v3286
    %v3289 = vunpack.c.l.s4 1966171168
    %v3290 = vunpack.c.0.s8 %v3289
    %v3291 = vlaneseq
    %v3292 = vshrl.u32 %v3291, 7
    %v3293 = vsub.s32 %v3290, %v3292
    %v3294 = vrot.slane %v3266, %v3293
    %v3295 = vcombine.high %v3273, %v3273
    %v3296 = vcombine.high %v3280, %v3280
    %v3297 = vcombine.high %v3287, %v3287
    %v3298 = vcombine.high %v3294, %v3294
    %v3299 = vcombine.high %v3139, %v3139
    %v3301 = vunpack.c.l.s4 1966171168
    %v3302 = vunpack.c.0.s8 %v3301
    %v3303 = vlaneseq
    %v3304 = vshrl.u32 %v3303, 7
    %v3305 = vsub.s32 %v3302, %v3304
    %v3306 = vrot.slane %v3139, %v3305
    %v3308 = vunpack.c.l.s4 1966171168
    %v3309 = vunpack.c.0.s8 %v3308
    %v3310 = vlaneseq
    %v3311 = vshrl.u32 %v3310, 7
    %v3312 = vsub.s32 %v3309, %v3311
    %v3313 = vrot.slane %v3299, %v3312
    %v3314 = vcombine.high %v3306, %v3306
    %v3315 = vcombine.high %v3313, %v3313
    %v3317 = vunpack.c.l.s4 1966171168
    %v3318 = vunpack.c.0.s8 %v3317
    %v3319 = vlaneseq
    %v3320 = vshrl.u32 %v3319, 7
    %v3321 = vsub.s32 %v3318, %v3320
    %v3322 = vrot.slane %v3306, %v3321
    %v3324 = vunpack.c.l.s4 1966171168
    %v3325 = vunpack.c.0.s8 %v3324
    %v3326 = vlaneseq
    %v3327 = vshrl.u32 %v3326, 7
    %v3328 = vsub.s32 %v3325, %v3327
    %v3329 = vrot.slane %v3313, %v3328
    %v3331 = vunpack.c.l.s4 1966171168
    %v3332 = vunpack.c.0.s8 %v3331
    %v3333 = vlaneseq
    %v3334 = vshrl.u32 %v3333, 7
    %v3335 = vsub.s32 %v3332, %v3334
    %v3336 = vrot.slane %v3314, %v3335
    %v3338 = vunpack.c.l.s4 1966171168
    %v3339 = vunpack.c.0.s8 %v3338
    %v3340 = vlaneseq
    %v3341 = vshrl.u32 %v3340, 7
    %v3342 = vsub.s32 %v3339, %v3341
    %v3343 = vrot.slane %v3315, %v3342
    %v3344 = vcombine.high %v3322, %v3322
    %v3345 = vcombine.high %v3329, %v3329
    %v3346 = vcombine.high %v3336, %v3336
    %v3347 = vcombine.high %v3343, %v3343
    %v3348 = vcombine.high %v3140, %v3140
    %v3350 = vunpack.c.l.s4 1966171168
    %v3351 = vunpack.c.0.s8 %v3350
    %v3352 = vlaneseq
    %v3353 = vshrl.u32 %v3352, 7
    %v3354 = vsub.s32 %v3351, %v3353
    %v3355 = vrot.slane %v3140, %v3354
    %v3357 = vunpack.c.l.s4 1966171168
    %v3358 = vunpack.c.0.s8 %v3357
    %v3359 = vlaneseq
    %v3360 = vshrl.u32 %v3359, 7
    %v3361 = vsub.s32 %v3358, %v3360
    %v3362 = vrot.slane %v3348, %v3361
    %v3363 = vcombine.high %v3355, %v3355
    %v3364 = vcombine.high %v3362, %v3362
    %v3366 = vunpack.c.l.s4 1966171168
    %v3367 = vunpack.c.0.s8 %v3366
    %v3368 = vlaneseq
    %v3369 = vshrl.u32 %v3368, 7
    %v3370 = vsub.s32 %v3367, %v3369
    %v3371 = vrot.slane %v3355, %v3370
    %v3373 = vunpack.c.l.s4 1966171168
    %v3374 = vunpack.c.0.s8 %v3373
    %v3375 = vlaneseq
    %v3376 = vshrl.u32 %v3375, 7
    %v3377 = vsub.s32 %v3374, %v3376
    %v3378 = vrot.slane %v3362, %v3377
    %v3380 = vunpack.c.l.s4 1966171168
    %v3381 = vunpack.c.0.s8 %v3380
    %v3382 = vlaneseq
    %v3383 = vshrl.u32 %v3382, 7
    %v3384 = vsub.s32 %v3381, %v3383
    %v3385 = vrot.slane %v3363, %v3384
    %v3387 = vunpack.c.l.s4 1966171168
    %v3388 = vunpack.c.0.s8 %v3387
    %v3389 = vlaneseq
    %v3390 = vshrl.u32 %v3389, 7
    %v3391 = vsub.s32 %v3388, %v3390
    %v3392 = vrot.slane %v3364, %v3391
    %v3393 = vcombine.high %v3371, %v3371
    %v3394 = vcombine.high %v3378, %v3378
    %v3395 = vcombine.high %v3385, %v3385
    %v3396 = vcombine.high %v3392, %v3392
    %v3397 = vcombine.high %v3141, %v3141
    %v3399 = vunpack.c.l.s4 1966171168
    %v3400 = vunpack.c.0.s8 %v3399
    %v3401 = vlaneseq
    %v3402 = vshrl.u32 %v3401, 7
    %v3403 = vsub.s32 %v3400, %v3402
    %v3404 = vrot.slane %v3141, %v3403
    %v3406 = vunpack.c.l.s4 1966171168
    %v3407 = vunpack.c.0.s8 %v3406
    %v3408 = vlaneseq
    %v3409 = vshrl.u32 %v3408, 7
    %v3410 = vsub.s32 %v3407, %v3409
    %v3411 = vrot.slane %v3397, %v3410
    %v3412 = vcombine.high %v3404, %v3404
    %v3413 = vcombine.high %v3411, %v3411
    %v3415 = vunpack.c.l.s4 1966171168
    %v3416 = vunpack.c.0.s8 %v3415
    %v3417 = vlaneseq
    %v3418 = vshrl.u32 %v3417, 7
    %v3419 = vsub.s32 %v3416, %v3418
    %v3420 = vrot.slane %v3404, %v3419
    %v3422 = vunpack.c.l.s4 1966171168
    %v3423 = vunpack.c.0.s8 %v3422
    %v3424 = vlaneseq
    %v3425 = vshrl.u32 %v3424, 7
    %v3426 = vsub.s32 %v3423, %v3425
    %v3427 = vrot.slane %v3411, %v3426
    %v3429 = vunpack.c.l.s4 1966171168
    %v3430 = vunpack.c.0.s8 %v3429
    %v3431 = vlaneseq
    %v3432 = vshrl.u32 %v3431, 7
    %v3433 = vsub.s32 %v3430, %v3432
    %v3434 = vrot.slane %v3412, %v3433
    %v3436 = vunpack.c.l.s4 1966171168
    %v3437 = vunpack.c.0.s8 %v3436
    %v3438 = vlaneseq
    %v3439 = vshrl.u32 %v3438, 7
    %v3440 = vsub.s32 %v3437, %v3439
    %v3441 = vrot.slane %v3413, %v3440
    %v3442 = vcombine.high %v3420, %v3420
    %v3443 = vcombine.high %v3427, %v3427
    %v3444 = vcombine.high %v3434, %v3434
    %v3445 = vcombine.high %v3441, %v3441
    %v3446 = vcombine.high %v3142, %v3142
    %v3448 = vunpack.c.l.s4 1966171168
    %v3449 = vunpack.c.0.s8 %v3448
    %v3450 = vlaneseq
    %v3451 = vshrl.u32 %v3450, 7
    %v3452 = vsub.s32 %v3449, %v3451
    %v3453 = vrot.slane %v3142, %v3452
    %v3455 = vunpack.c.l.s4 1966171168
    %v3456 = vunpack.c.0.s8 %v3455
    %v3457 = vlaneseq
    %v3458 = vshrl.u32 %v3457, 7
    %v3459 = vsub.s32 %v3456, %v3458
    %v3460 = vrot.slane %v3446, %v3459
    %v3461 = vcombine.high %v3453, %v3453
    %v3462 = vcombine.high %v3460, %v3460
    %v3464 = vunpack.c.l.s4 1966171168
    %v3465 = vunpack.c.0.s8 %v3464
    %v3466 = vlaneseq
    %v3467 = vshrl.u32 %v3466, 7
    %v3468 = vsub.s32 %v3465, %v3467
    %v3469 = vrot.slane %v3453, %v3468
    %v3471 = vunpack.c.l.s4 1966171168
    %v3472 = vunpack.c.0.s8 %v3471
    %v3473 = vlaneseq
    %v3474 = vshrl.u32 %v3473, 7
    %v3475 = vsub.s32 %v3472, %v3474
    %v3476 = vrot.slane %v3460, %v3475
    %v3478 = vunpack.c.l.s4 1966171168
    %v3479 = vunpack.c.0.s8 %v3478
    %v3480 = vlaneseq
    %v3481 = vshrl.u32 %v3480, 7
    %v3482 = vsub.s32 %v3479, %v3481
    %v3483 = vrot.slane %v3461, %v3482
    %v3485 = vunpack.c.l.s4 1966171168
    %v3486 = vunpack.c.0.s8 %v3485
    %v3487 = vlaneseq
    %v3488 = vshrl.u32 %v3487, 7
    %v3489 = vsub.s32 %v3486, %v3488
    %v3490 = vrot.slane %v3462, %v3489
    %v3491 = vcombine.high %v3469, %v3469
    %v3492 = vcombine.high %v3476, %v3476
    %v3493 = vcombine.high %v3483, %v3483
    %v3494 = vcombine.high %v3490, %v3490
    %v3495 = vcombine.high %v3143, %v3143
    %v3497 = vunpack.c.l.s4 1966171168
    %v3498 = vunpack.c.0.s8 %v3497
    %v3499 = vlaneseq
    %v3500 = vshrl.u32 %v3499, 7
    %v3501 = vsub.s32 %v3498, %v3500
    %v3502 = vrot.slane %v3143, %v3501
    %v3504 = vunpack.c.l.s4 1966171168
    %v3505 = vunpack.c.0.s8 %v3504
    %v3506 = vlaneseq
    %v3507 = vshrl.u32 %v3506, 7
    %v3508 = vsub.s32 %v3505, %v3507
    %v3509 = vrot.slane %v3495, %v3508
    %v3510 = vcombine.high %v3502, %v3502
    %v3511 = vcombine.high %v3509, %v3509
    %v3513 = vunpack.c.l.s4 1966171168
    %v3514 = vunpack.c.0.s8 %v3513
    %v3515 = vlaneseq
    %v3516 = vshrl.u32 %v3515, 7
    %v3517 = vsub.s32 %v3514, %v3516
    %v3518 = vrot.slane %v3502, %v3517
    %v3520 = vunpack.c.l.s4 1966171168
    %v3521 = vunpack.c.0.s8 %v3520
    %v3522 = vlaneseq
    %v3523 = vshrl.u32 %v3522, 7
    %v3524 = vsub.s32 %v3521, %v3523
    %v3525 = vrot.slane %v3509, %v3524
    %v3527 = vunpack.c.l.s4 1966171168
    %v3528 = vunpack.c.0.s8 %v3527
    %v3529 = vlaneseq
    %v3530 = vshrl.u32 %v3529, 7
    %v3531 = vsub.s32 %v3528, %v3530
    %v3532 = vrot.slane %v3510, %v3531
    %v3534 = vunpack.c.l.s4 1966171168
    %v3535 = vunpack.c.0.s8 %v3534
    %v3536 = vlaneseq
    %v3537 = vshrl.u32 %v3536, 7
    %v3538 = vsub.s32 %v3535, %v3537
    %v3539 = vrot.slane %v3511, %v3538
    %v3540 = vcombine.high %v3518, %v3518
    %v3541 = vcombine.high %v3525, %v3525
    %v3542 = vcombine.high %v3532, %v3532
    %v3543 = vcombine.high %v3539, %v3539
    %3608 = vst [vmem:[#allocation2] sm:$0x1] %v3175
    %3609 = vst [vmem:[#allocation2 + $0x1] sm:$0x1] %v3189
    %3610 = vst [vmem:[#allocation2 + $0x2] sm:$0x1] %v3197
    %3611 = vst [vmem:[#allocation2 + $0x3] sm:$0x1] %v3199
    %3612 = vst [vmem:[#allocation2 + $0x4] sm:$0x1] %v3182
    %3613 = vst [vmem:[#allocation2 + $0x5] sm:$0x1] %v3196
    %3614 = vst [vmem:[#allocation2 + $0x6] sm:$0x1] %v3198
    %3615 = vst [vmem:[#allocation2 + $0x7] sm:$0x1] %v3200
    %3616 = vst [vmem:[#allocation2 + $0x8] sm:$0x1] %v3224
    %3617 = vst [vmem:[#allocation2 + $0x9] sm:$0x1] %v3238
    %3618 = vst [vmem:[#allocation2 + $0xa] sm:$0x1] %v3246
    %3619 = vst [vmem:[#allocation2 + $0xb] sm:$0x1] %v3248
    %3620 = vst [vmem:[#allocation2 + $0xc] sm:$0x1] %v3231
    %3621 = vst [vmem:[#allocation2 + $0xd] sm:$0x1] %v3245
    %3622 = vst [vmem:[#allocation2 + $0xe] sm:$0x1] %v3247
    %3623 = vst [vmem:[#allocation2 + $0xf] sm:$0x1] %v3249
    %3624 = vst [vmem:[#allocation2 + $0x10] sm:$0x1] %v3273
    %3625 = vst [vmem:[#allocation2 + $0x11] sm:$0x1] %v3287
    %3626 = vst [vmem:[#allocation2 + $0x12] sm:$0x1] %v3295
    %3627 = vst [vmem:[#allocation2 + $0x13] sm:$0x1] %v3297
    %3628 = vst [vmem:[#allocation2 + $0x14] sm:$0x1] %v3280
    %3629 = vst [vmem:[#allocation2 + $0x15] sm:$0x1] %v3294
    %3630 = vst [vmem:[#allocation2 + $0x16] sm:$0x1] %v3296
    %3631 = vst [vmem:[#allocation2 + $0x17] sm:$0x1] %v3298
    %3632 = vst [vmem:[#allocation2 + $0x18] sm:$0x1] %v3322
    %3633 = vst [vmem:[#allocation2 + $0x19] sm:$0x1] %v3336
    %3634 = vst [vmem:[#allocation2 + $0x1a] sm:$0x1] %v3344
    %3635 = vst [vmem:[#allocation2 + $0x1b] sm:$0x1] %v3346
    %3636 = vst [vmem:[#allocation2 + $0x1c] sm:$0x1] %v3329
    %3637 = vst [vmem:[#allocation2 + $0x1d] sm:$0x1] %v3343
    %3638 = vst [vmem:[#allocation2 + $0x1e] sm:$0x1] %v3345
    %3639 = vst [vmem:[#allocation2 + $0x1f] sm:$0x1] %v3347
    %3640 = vst [vmem:[#allocation2 + $0x20] sm:$0x1] %v3371
    %3641 = vst [vmem:[#allocation2 + $0x21] sm:$0x1] %v3385
    %3642 = vst [vmem:[#allocation2 + $0x22] sm:$0x1] %v3393
    %3643 = vst [vmem:[#allocation2 + $0x23] sm:$0x1] %v3395
    %3644 = vst [vmem:[#allocation2 + $0x24] sm:$0x1] %v3378
    %3645 = vst [vmem:[#allocation2 + $0x25] sm:$0x1] %v3392
    %3646 = vst [vmem:[#allocation2 + $0x26] sm:$0x1] %v3394
    %3647 = vst [vmem:[#allocation2 + $0x27] sm:$0x1] %v3396
    %3648 = vst [vmem:[#allocation2 + $0x28] sm:$0x1] %v3420
    %3649 = vst [vmem:[#allocation2 + $0x29] sm:$0x1] %v3434
    %3650 = vst [vmem:[#allocation2 + $0x2a] sm:$0x1] %v3442
    %3651 = vst [vmem:[#allocation2 + $0x2b] sm:$0x1] %v3444
    %3652 = vst [vmem:[#allocation2 + $0x2c] sm:$0x1] %v3427
    %3653 = vst [vmem:[#allocation2 + $0x2d] sm:$0x1] %v3441
    %3654 = vst [vmem:[#allocation2 + $0x2e] sm:$0x1] %v3443
    %3655 = vst [vmem:[#allocation2 + $0x2f] sm:$0x1] %v3445
    %3656 = vst [vmem:[#allocation2 + $0x30] sm:$0x1] %v3469
    %3657 = vst [vmem:[#allocation2 + $0x31] sm:$0x1] %v3483
    %3658 = vst [vmem:[#allocation2 + $0x32] sm:$0x1] %v3491
    %3659 = vst [vmem:[#allocation2 + $0x33] sm:$0x1] %v3493
    %3660 = vst [vmem:[#allocation2 + $0x34] sm:$0x1] %v3476
    %3661 = vst [vmem:[#allocation2 + $0x35] sm:$0x1] %v3490
    %3662 = vst [vmem:[#allocation2 + $0x36] sm:$0x1] %v3492
    %3663 = vst [vmem:[#allocation2 + $0x37] sm:$0x1] %v3494
    %3664 = vst [vmem:[#allocation2 + $0x38] sm:$0x1] %v3518
    %3665 = vst [vmem:[#allocation2 + $0x39] sm:$0x1] %v3532
    %3666 = vst [vmem:[#allocation2 + $0x3a] sm:$0x1] %v3540
    %3667 = vst [vmem:[#allocation2 + $0x3b] sm:$0x1] %v3542
    %3668 = vst [vmem:[#allocation2 + $0x3c] sm:$0x1] %v3525
    %3669 = vst [vmem:[#allocation2 + $0x3d] sm:$0x1] %v3539
    %3670 = vst [vmem:[#allocation2 + $0x3e] sm:$0x1] %v3541
    %3671 = vst [vmem:[#allocation2 + $0x3f] sm:$0x1] %v3543
    // Predicated region
    $region30: #{mlp_forward.1} parent=1 // pred_check
      _
    $region31: #{mlp_forward.1} parent=1 // pred_check_branch
      %3673 = sbr.rel (0) target = $region33
    $region32: #{mlp_forward.1} parent=1 // pred_region
      // Predicated region
      $region34: #{mlp_forward.1} parent=32 // pred_check
        _
      $region35: #{mlp_forward.1} parent=32 // pred_check_branch
        %3675 = sbr.rel (0) target = $region37
      $region36: #{mlp_forward.1} parent=32 // pred_region
        // Predicated region
        $region38: #{mlp_forward.1} parent=36 // pred_check
          _
        $region39: #{mlp_forward.1} parent=36 // pred_check_branch
          %3677 = sbr.rel target = $region41
        $region40: #{mlp_forward.1} parent=36 // pred_region
          // Predicated region
          $region53: #{mlp_forward.1} parent=40 // pred_check
            _
          $region54: #{mlp_forward.1} parent=40 // pred_check_branch
            %3692 = sbr.rel (0) target = $region56
          $region55: #{mlp_forward.1} parent=40 // pred_region
            loop: start=0, step=1, limit=1
            $region57: #{mlp_forward.1} parent=55 // loop_pre_header
              _
            $region58: #{mlp_forward.1} parent=55 // loop_header
              %s3695 = sphi 0, %s3699
              %p3696 = scmp.ge.s32.totalorder %s3695, 1
              %s3700 = sphi [#allocation2], [#allocation2]
              %s3701 = sphi %s7, %s7
            $region59: #{mlp_forward.1} parent=55 // loop_header_branch
              %3698 = sbr.rel (%p3696) target = $region63
            $region60: #{mlp_forward.1} parent=55 // loop_body
              %v3702 = vld [vmem:[%s3700] sm:$0x1]
              %3703 = vst [vmem:[%s3701] sm:$0x1] %v3702
            $region61: #{mlp_forward.1} parent=55 // loop_footer
              %s3699 = sadd.s32 1, %s3695
            $region62: #{mlp_forward.1} parent=55 // loop_footer_branch
              %3694 = sbr.rel target = $region58
            $region63: #{mlp_forward.1} parent=55 // loop_exit
              _
          $region56: #{mlp_forward.1} parent=40 // pred_fallthru
            _
        $region41: #{mlp_forward.1} parent=36 // pred_fallthru
          _
        // Predicated region
        $region42: #{mlp_forward.1} parent=36 // pred_check
          _
        $region43: #{mlp_forward.1} parent=36 // pred_check_branch
          %3679 = sbr.rel (0) target = $region45
        $region44: #{mlp_forward.1} parent=36 // pred_region
          loop: start=0, step=1, limit=1
          $region46: #{mlp_forward.1} parent=44 // loop_pre_header
            _
          $region47: #{mlp_forward.1} parent=44 // loop_header
            %s3682 = sphi 0, %s3686
            %p3683 = scmp.ge.s32.totalorder %s3682, 1
            %s3687 = sphi [#allocation2], [#allocation2]
            %s3688 = sphi %s7, %s7
          $region48: #{mlp_forward.1} parent=44 // loop_header_branch
            %3685 = sbr.rel (%p3683) target = $region52
          $region49: #{mlp_forward.1} parent=44 // loop_body
            %v3689 = vld [vmem:[%s3687] sm:$0x1]
            %3690 = vst [vmem:[%s3688] sm:$0x1] %v3689
          $region50: #{mlp_forward.1} parent=44 // loop_footer
            %s3686 = sadd.s32 1, %s3682
          $region51: #{mlp_forward.1} parent=44 // loop_footer_branch
            %3681 = sbr.rel target = $region47
          $region52: #{mlp_forward.1} parent=44 // loop_exit
            _
        $region45: #{mlp_forward.1} parent=36 // pred_fallthru
          _
      $region37: #{mlp_forward.1} parent=32 // pred_fallthru
        _
      %3704 = vnop
    $region33: #{mlp_forward.1} parent=1 // pred_fallthru
      _
    // Predicated region
    $region64: #{mlp_forward.1} parent=1 // pred_check
      _
    $region65: #{mlp_forward.1} parent=1 // pred_check_branch
      %3706 = sbr.rel (0) target = $region67
    $region66: #{mlp_forward.1} parent=1 // pred_region
      _
    $region67: #{mlp_forward.1} parent=1 // pred_fallthru
      _

</llo_original>
